<compile_context>
chip_gen: v5e
topology: v5e:2x2
jax: 0.10.0
libtpu: 0.0.40
codegen_flags: <defaults>
</compile_context>

<pallas_src>
import jax
import jax.numpy as jnp
from jax.experimental import pallas as pl
from jax.experimental.pallas import tpu as pltpu

EPS = 1e-5
LANE = 128


def _bn_add_conv_bn_kernel(x441_ref, x428_ref, g1_ref, b1_ref, w_ref,
                           g2_ref, b2_ref, o_ref):
    # x441_ref / x428_ref: (P, Cin)   (same block every grid step -> resident)
    # g1/b1: (1, Cin), w: (Cin, tn), g2/b2: (1, tn), o: (P, tn)
    x = x441_ref[...]

    # --- BatchNorm2d(272), training mode: one-pass batch stats, fused affine
    mean1 = jnp.mean(x, axis=0, keepdims=True)                     # (1, Cin)
    var1 = jnp.mean(x * x, axis=0, keepdims=True) - mean1 * mean1
    a1 = g1_ref[...] * jax.lax.rsqrt(var1 + EPS)
    c1 = b1_ref[...] - a1 * mean1

    # --- normalize + residual add (cheap: P x Cin, recomputed per Cout tile)
    y = a1 * x + c1 + x428_ref[...]                                # (P, Cin)

    # --- Conv2d 1x1 (Cin -> tn slice of Cout), no bias == MXU matmul
    z = jnp.dot(y, w_ref[...], preferred_element_type=jnp.float32)  # (P, tn)

    # --- BatchNorm2d(1632), training mode: per-channel stats are local to
    #     this Cout tile (reduction is only over pixels P).
    mean2 = jnp.mean(z, axis=0, keepdims=True)                     # (1, tn)
    var2 = jnp.mean(z * z, axis=0, keepdims=True) - mean2 * mean2
    a2 = g2_ref[...] * jax.lax.rsqrt(var2 + EPS)
    c2 = b2_ref[...] - a2 * mean2
    o_ref[...] = a2 * z + c2


def bn_add_conv_bn(x441, x428, gamma1, beta1, w, gamma2, beta2, *, tn=896):
    """x441, x428: (N, Cin, H, W) NCHW.  Returns (N, Cout, H, W)."""
    N, Cin, H, W = x441.shape
    Cout = w.shape[0]
    P = N * H * W

    # --- choose a lane-aligned Cout tile and pad Cout up to a multiple of it
    cout_lane = pl.cdiv(Cout, LANE) * LANE          # 1632 -> 1664
    tn = min(tn, cout_lane)
    tn = pl.cdiv(tn, LANE) * LANE                   # multiple of 128
    n_tiles = pl.cdiv(cout_lane, tn)                # 2 tiles of 896
    cout_pad = n_tiles * tn                         # 1792
    pad_c = cout_pad - Cout

    # --- NCHW -> (P, Cin)
    x441_2d = jnp.transpose(x441, (0, 2, 3, 1)).reshape(P, Cin)
    x428_2d = jnp.transpose(x428, (0, 2, 3, 1)).reshape(P, Cin)

    # conv weight (Cout, Cin, 1, 1) -> (Cin, Cout_pad), zero-padded columns
    w2d = jnp.transpose(w.reshape(Cout, Cin), (1, 0))
    w2d = jnp.pad(w2d, ((0, 0), (0, pad_c)))

    g1 = gamma1.reshape(1, Cin)
    b1 = beta1.reshape(1, Cin)
    g2 = jnp.pad(gamma2, (0, pad_c), constant_values=1.0).reshape(1, cout_pad)
    b2 = jnp.pad(beta2, (0, pad_c)).reshape(1, cout_pad)

    cost = pl.CostEstimate(
        flops=2 * P * Cin * cout_pad,
        transcendentals=Cin + cout_pad,                    # the two rsqrt's
        bytes_accessed=4 * (2 * P * Cin + Cin * cout_pad
                            + P * cout_pad + 2 * Cin + 2 * cout_pad),
    )

    out2d = pl.pallas_call(
        _bn_add_conv_bn_kernel,
        out_shape=jax.ShapeDtypeStruct((P, cout_pad), jnp.float32),
        grid=(n_tiles,),
        in_specs=[
            pl.BlockSpec((P, Cin), lambda j: (0, 0)),      # x441 (resident)
            pl.BlockSpec((P, Cin), lambda j: (0, 0)),      # x428 (resident)
            pl.BlockSpec((1, Cin), lambda j: (0, 0)),      # gamma1
            pl.BlockSpec((1, Cin), lambda j: (0, 0)),      # beta1
            pl.BlockSpec((Cin, tn), lambda j: (0, j)),     # weight tile
            pl.BlockSpec((1, tn), lambda j: (0, j)),       # gamma2 tile
            pl.BlockSpec((1, tn), lambda j: (0, j)),       # beta2 tile
        ],
        out_specs=pl.BlockSpec((P, tn), lambda j: (0, j)),
        compiler_params=pltpu.CompilerParams(
            dimension_semantics=("parallel",)),
        cost_estimate=cost,
    )(x441_2d, x428_2d, g1, b1, w2d, g2, b2)

    # (P, Cout_pad) -> drop padding -> NCHW
    out2d = out2d[:, :Cout]
    return jnp.transpose(out2d.reshape(N, H, W, Cout), (0, 3, 1, 2))


def _reference(x441, x428, gamma1, beta1, w, gamma2, beta2):
    """Pure-JAX reference of the PyTorch forward (training-mode BN)."""
    def bn(x, g, b):
        mean = jnp.mean(x, axis=(0, 2, 3), keepdims=True)
        var = jnp.mean((x - mean) ** 2, axis=(0, 2, 3), keepdims=True)
        return g[None, :, None, None] * (x - mean) * jax.lax.rsqrt(var + EPS) \
            + b[None, :, None, None]

    y = bn(x441, gamma1, beta1) + x428
    # 1x1 conv: NCHW einsum
    z = jnp.einsum('nchw,oc->nohw', y, w.reshape(w.shape[0], w.shape[1]))
    return bn(z, gamma2, beta2)


if __name__ == "__main__":
    N, Cin, H, W = 1, 272, 7, 7
    Cout = 1632

    key = jax.random.PRNGKey(0)
    k1, k2, k3, k4, k5, k6, k7 = jax.random.split(key, 7)

    x441 = jax.random.normal(k1, (N, Cin, H, W), dtype=jnp.float32)
    x428 = jax.random.normal(k2, (N, Cin, H, W), dtype=jnp.float32)

    # Deterministic synthetic parameters (shapes match the module __init__).
    gamma1 = 1.0 + 0.1 * jax.random.normal(k3, (Cin,), dtype=jnp.float32)
    beta1 = 0.1 * jax.random.normal(k4, (Cin,), dtype=jnp.float32)
    conv_w = 0.05 * jax.random.normal(k5, (Cout, Cin, 1, 1), dtype=jnp.float32)
    gamma2 = 1.0 + 0.1 * jax.random.normal(k6, (Cout,), dtype=jnp.float32)
    beta2 = 0.1 * jax.random.normal(k7, (Cout,), dtype=jnp.float32)

    out = bn_add_conv_bn(x441, x428, gamma1, beta1, conv_w, gamma2, beta2)
    out = jax.block_until_ready(out)

    ref = _reference(x441, x428, gamma1, beta1, conv_w, gamma2, beta2)
    ref = jax.block_until_ready(ref)

    assert out.shape == (N, Cout, H, W), out.shape
    assert jnp.allclose(out, ref, atol=2e-3, rtol=2e-3), \
        float(jnp.max(jnp.abs(out - ref)))

    print("KERNEL_OK")
</pallas_src>

<mosaic_0001>
module attributes {stable_mosaic.version = 11 : i64} {
  func.func @_bn_add_conv_bn_kernel(%arg0: i32, %arg1: memref<49x272xf32, #tpu.memory_space<vmem>>, %arg2: memref<49x272xf32, #tpu.memory_space<vmem>>, %arg3: memref<1x272xf32, #tpu.memory_space<vmem>>, %arg4: memref<1x272xf32, #tpu.memory_space<vmem>>, %arg5: memref<272x896xf32, #tpu.memory_space<vmem>>, %arg6: memref<1x896xf32, #tpu.memory_space<vmem>>, %arg7: memref<1x896xf32, #tpu.memory_space<vmem>>, %arg8: memref<49x896xf32, #tpu.memory_space<vmem>>) attributes {dimension_semantics = [#tpu.dimension_semantics<parallel>], iteration_bounds = array<i64: 2>, scalar_prefetch = 0 : i64, scratch_operands = 0 : i64, tpu.core_type = #tpu.core_type<tc>, window_params = [{pipeline_mode = #tpu.pipeline_mode<synchronous>, transform_indices = @transform_0, window_bounds = array<i64: 49, 272>}, {pipeline_mode = #tpu.pipeline_mode<synchronous>, transform_indices = @transform_1, window_bounds = array<i64: 49, 272>}, {pipeline_mode = #tpu.pipeline_mode<synchronous>, transform_indices = @transform_2, window_bounds = array<i64: 1, 272>}, {pipeline_mode = #tpu.pipeline_mode<synchronous>, transform_indices = @transform_3, window_bounds = array<i64: 1, 272>}, {transform_indices = @transform_4, window_bounds = array<i64: 272, 896>}, {transform_indices = @transform_5, window_bounds = array<i64: 1, 896>}, {transform_indices = @transform_6, window_bounds = array<i64: 1, 896>}, {transform_indices = @transform_7, window_bounds = array<i64: 49, 896>}]} {
    %c0 = arith.constant 0 : index
    %c0_0 = arith.constant 0 : index
    %0 = vector.load %arg1[%c0, %c0_0] : memref<49x272xf32, #tpu.memory_space<vmem>>, vector<49x272xf32>
    %cst = arith.constant dense<0.000000e+00> : vector<272xf32>
    %1 = vector.multi_reduction <add>, %0, %cst [0] : vector<49x272xf32> to vector<272xf32>
    %2 = vector.shape_cast %1 : vector<272xf32> to vector<1x272xf32>
    %cst_1 = arith.constant 4.900000e+01 : f32
    %3 = vector.broadcast %cst_1 : f32 to vector<1x272xf32>
    %4 = arith.divf %2, %3 : vector<1x272xf32>
    %5 = arith.mulf %0, %0 : vector<49x272xf32>
    %cst_2 = arith.constant dense<0.000000e+00> : vector<272xf32>
    %6 = vector.multi_reduction <add>, %5, %cst_2 [0] : vector<49x272xf32> to vector<272xf32>
    %7 = vector.shape_cast %6 : vector<272xf32> to vector<1x272xf32>
    %cst_3 = arith.constant 4.900000e+01 : f32
    %8 = vector.broadcast %cst_3 : f32 to vector<1x272xf32>
    %9 = arith.divf %7, %8 : vector<1x272xf32>
    %10 = arith.mulf %4, %4 : vector<1x272xf32>
    %11 = arith.subf %9, %10 : vector<1x272xf32>
    %c0_4 = arith.constant 0 : index
    %c0_5 = arith.constant 0 : index
    %12 = vector.load %arg3[%c0_4, %c0_5] : memref<1x272xf32, #tpu.memory_space<vmem>>, vector<1x272xf32>
    %cst_6 = arith.constant 9.99999974E-6 : f32
    %13 = vector.broadcast %cst_6 : f32 to vector<1x272xf32>
    %14 = arith.addf %11, %13 : vector<1x272xf32>
    %15 = math.rsqrt %14 : vector<1x272xf32>
    %16 = arith.mulf %12, %15 : vector<1x272xf32>
    %c0_7 = arith.constant 0 : index
    %c0_8 = arith.constant 0 : index
    %17 = vector.load %arg4[%c0_7, %c0_8] : memref<1x272xf32, #tpu.memory_space<vmem>>, vector<1x272xf32>
    %18 = arith.mulf %16, %4 : vector<1x272xf32>
    %19 = arith.subf %17, %18 : vector<1x272xf32>
    %20 = vector.broadcast %16 : vector<1x272xf32> to vector<49x272xf32>
    %21 = arith.mulf %20, %0 : vector<49x272xf32>
    %22 = vector.broadcast %19 : vector<1x272xf32> to vector<49x272xf32>
    %23 = arith.addf %21, %22 : vector<49x272xf32>
    %c0_9 = arith.constant 0 : index
    %c0_10 = arith.constant 0 : index
    %24 = vector.load %arg2[%c0_9, %c0_10] : memref<49x272xf32, #tpu.memory_space<vmem>>, vector<49x272xf32>
    %25 = arith.addf %23, %24 : vector<49x272xf32>
    %c0_11 = arith.constant 0 : index
    %c0_12 = arith.constant 0 : index
    %26 = vector.load %arg5[%c0_11, %c0_12] : memref<272x896xf32, #tpu.memory_space<vmem>>, vector<272x896xf32>
    %cst_13 = arith.constant dense<0.000000e+00> : vector<49x896xf32>
    %27 = tpu.matmul %25, %26, %cst_13 {dimension_numbers = #tpu.dot_dimension_numbers<[1], [0], [0], [1], [0, 0, 1, 1], [], []>} : vector<49x272xf32>, vector<272x896xf32>, vector<49x896xf32> -> vector<49x896xf32>
    %cst_14 = arith.constant dense<0.000000e+00> : vector<896xf32>
    %28 = vector.multi_reduction <add>, %27, %cst_14 [0] : vector<49x896xf32> to vector<896xf32>
    %29 = vector.shape_cast %28 : vector<896xf32> to vector<1x896xf32>
    %cst_15 = arith.constant 4.900000e+01 : f32
    %30 = vector.broadcast %cst_15 : f32 to vector<1x896xf32>
    %31 = arith.divf %29, %30 : vector<1x896xf32>
    %32 = arith.mulf %27, %27 : vector<49x896xf32>
    %cst_16 = arith.constant dense<0.000000e+00> : vector<896xf32>
    %33 = vector.multi_reduction <add>, %32, %cst_16 [0] : vector<49x896xf32> to vector<896xf32>
    %34 = vector.shape_cast %33 : vector<896xf32> to vector<1x896xf32>
    %cst_17 = arith.constant 4.900000e+01 : f32
    %35 = vector.broadcast %cst_17 : f32 to vector<1x896xf32>
    %36 = arith.divf %34, %35 : vector<1x896xf32>
    %37 = arith.mulf %31, %31 : vector<1x896xf32>
    %38 = arith.subf %36, %37 : vector<1x896xf32>
    %c0_18 = arith.constant 0 : index
    %c0_19 = arith.constant 0 : index
    %39 = vector.load %arg6[%c0_18, %c0_19] : memref<1x896xf32, #tpu.memory_space<vmem>>, vector<1x896xf32>
    %cst_20 = arith.constant 9.99999974E-6 : f32
    %40 = vector.broadcast %cst_20 : f32 to vector<1x896xf32>
    %41 = arith.addf %38, %40 : vector<1x896xf32>
    %42 = math.rsqrt %41 : vector<1x896xf32>
    %43 = arith.mulf %39, %42 : vector<1x896xf32>
    %c0_21 = arith.constant 0 : index
    %c0_22 = arith.constant 0 : index
    %44 = vector.load %arg7[%c0_21, %c0_22] : memref<1x896xf32, #tpu.memory_space<vmem>>, vector<1x896xf32>
    %45 = arith.mulf %43, %31 : vector<1x896xf32>
    %46 = arith.subf %44, %45 : vector<1x896xf32>
    %47 = vector.broadcast %43 : vector<1x896xf32> to vector<49x896xf32>
    %48 = arith.mulf %47, %27 : vector<49x896xf32>
    %49 = vector.broadcast %46 : vector<1x896xf32> to vector<49x896xf32>
    %50 = arith.addf %48, %49 : vector<49x896xf32>
    %c0_23 = arith.constant 0 : index
    %c0_24 = arith.constant 0 : index
    %51 = vector.load %arg8[%c0_23, %c0_24] : memref<49x896xf32, #tpu.memory_space<vmem>>, vector<49x896xf32>
    tpu.vector_store %arg8[%c0_23, %c0_24], %50 {strides = array<i32>} : memref<49x896xf32, #tpu.memory_space<vmem>>, vector<49x896xf32>,
    return
  }
  func.func @transform_0(%arg0: i32) -> (i32, i32) {
    %c0_i32 = arith.constant 0 : i32
    %c0_i32_0 = arith.constant 0 : i32
    %c0_i32_1 = arith.constant 0 : i32
    return %c0_i32, %c0_i32_0 : i32, i32
  }
  func.func @transform_1(%arg0: i32) -> (i32, i32) {
    %c0_i32 = arith.constant 0 : i32
    %c0_i32_0 = arith.constant 0 : i32
    %c0_i32_1 = arith.constant 0 : i32
    return %c0_i32, %c0_i32_0 : i32, i32
  }
  func.func @transform_2(%arg0: i32) -> (i32, i32) {
    %c0_i32 = arith.constant 0 : i32
    %c0_i32_0 = arith.constant 0 : i32
    %c0_i32_1 = arith.constant 0 : i32
    return %c0_i32, %c0_i32_0 : i32, i32
  }
  func.func @transform_3(%arg0: i32) -> (i32, i32) {
    %c0_i32 = arith.constant 0 : i32
    %c0_i32_0 = arith.constant 0 : i32
    %c0_i32_1 = arith.constant 0 : i32
    return %c0_i32, %c0_i32_0 : i32, i32
  }
  func.func @transform_4(%arg0: i32) -> (i32, i32) {
    %c0_i32 = arith.constant 0 : i32
    %c0_i32_0 = arith.constant 0 : i32
    return %c0_i32, %arg0 : i32, i32
  }
  func.func @transform_5(%arg0: i32) -> (i32, i32) {
    %c0_i32 = arith.constant 0 : i32
    %c0_i32_0 = arith.constant 0 : i32
    return %c0_i32, %arg0 : i32, i32
  }
  func.func @transform_6(%arg0: i32) -> (i32, i32) {
    %c0_i32 = arith.constant 0 : i32
    %c0_i32_0 = arith.constant 0 : i32
    return %c0_i32, %arg0 : i32, i32
  }
  func.func @transform_7(%arg0: i32) -> (i32, i32) {
    %c0_i32 = arith.constant 0 : i32
    %c0_i32_0 = arith.constant 0 : i32
    return %c0_i32, %arg0 : i32, i32
  }
}

</mosaic_0001>

<llo_original>
// kernel: tpu_custom_call.1
$region0: #{tpu_custom_call.1}
  #allocation0 [shape = 'u32[]', space=smem, size = 0x4, offset = 0x4, fixed_abs, tag = 'smem constant byte address 0x4 - core index']
  #allocation1 [shape = 'u32[72,128]{1,0:T(1,128)}', space=vmem, size = 0x9000, scoped, tag = 'internal scratch']
  %s0 = inlined_call_operand.hbm [shape: f32[49,272], index: 0, kind: input, shape index: {}]
  %s1 = inlined_call_operand.hbm [shape: f32[49,272], index: 1, kind: input, shape index: {}]
  %s2 = inlined_call_operand.hbm [shape: f32[1,272], index: 2, kind: input, shape index: {}]
  %s3 = inlined_call_operand.hbm [shape: f32[1,272], index: 3, kind: input, shape index: {}]
  %s4 = inlined_call_operand.hbm [shape: f32[272,1792], index: 4, kind: input, shape index: {}]
  %s5 = inlined_call_operand.hbm [shape: f32[1,1792], index: 5, kind: input, shape index: {}]
  %s6 = inlined_call_operand.hbm [shape: f32[1,1792], index: 6, kind: input, shape index: {}]
  %s7 = inlined_call_operand.hbm [shape: f32[49,1792], index: 7, kind: output, shape index: {}]
  %s8 = sld [smem:[#allocation0]]
  $region89: #{tpu_custom_call.1} parent=0
    _
  %s10 = ssub.s32 1, %s8
  %s11 = scalar_select 0, %s10, %s8
  $region1: #{tpu_custom_call.1} parent=0
    #allocation2 [shape = 'u8[86016]{0}', space=vmem, size = 0x15000, scoped, tag = 'input window, operand 0, single buffered']
    #allocation3 [shape = 's32[2]{0}', space=sflag, size = 0x8, scoped, tag = 'scoped memory for tpu_custom_call.1']
    #allocation4 [shape = 's32[2]{0}', space=sflag, size = 0x8, scoped, tag = 'scoped memory for tpu_custom_call.1']
    #allocation5 [shape = 'u8[86016]{0}', space=vmem, size = 0x15000, scoped, tag = 'input window, operand 1, single buffered']
    #allocation6 [shape = 's32[1]{0}', space=sflag, size = 0x4, scoped, tag = 'scoped memory for tpu_custom_call.1']
    #allocation7 [shape = 'u8[1536]{0}', space=vmem, size = 0x800, scoped, tag = 'input window, operand 2, single buffered']
    #allocation8 [shape = 'u8[1536]{0}', space=vmem, size = 0x800, scoped, tag = 'input window, operand 3, single buffered']
    #allocation9 [shape = 's32[1]{0}', space=sflag, size = 0x4, scoped, tag = 'scoped memory for tpu_custom_call.1']
    #allocation10 [shape = 'u8[1949696]{0}', space=vmem, size = 0x1dc000, scoped, tag = 'input window, operand 4']
    #allocation11 [shape = 'u8[7168]{0}', space=vmem, size = 0x1c00, scoped, tag = 'input window, operand 5']
    #allocation12 [shape = 'u8[7168]{0}', space=vmem, size = 0x1c00, scoped, tag = 'input window, operand 6']
    #allocation13 [shape = 'u8[401408]{0}', space=vmem, size = 0x62000, scoped, tag = 'output window, operand 0']
    %12 = vsyncpa [#allocation3], 0
    %13 = vsyncpa [#allocation6], 0
    %14 = vsyncpa [#allocation9], 0
    %15 = vsyncpa [#allocation4], 0
    %s16 = scalar_lea.sflag [#allocation4], 1
    %17 = vsyncpa %s16, 0
    loop: start=0, step=1, limit=4
    $region2: #{tpu_custom_call.1} parent=1 // loop_pre_header
      _
    $region3: #{tpu_custom_call.1} parent=1 // loop_header
      %s19 = sphi 0, %s23
      %p20 = scmp.ge.s32.totalorder %s19, 4
      %s27 = sphi 0, %s27
      %s29 = sphi 0, %s27
      %s30 = sphi 0, %s29
      %s44 = sphi 0, %s30
      %s48 = sphi 0, %s48
      %s50 = sphi 0, %s48
      %s51 = sphi 0, %s50
      %s65 = sphi 0, %s51
      %s69 = sphi 0, %s69
      %s71 = sphi 0, %s69
      %s72 = sphi 0, %s71
      %s86 = sphi 0, %s72
      %s90 = sphi 0, %s90
      %s92 = sphi 0, %s90
      %s93 = sphi 0, %s92
      %s107 = sphi 0, %s93
      %s113 = sphi 0, %s115
      %s116 = sphi 0, %s113
      %s117 = sphi 0, %s116
      %s133 = sphi 0, %s117
      %s139 = sphi 0, %s141
      %s142 = sphi 0, %s139
      %s143 = sphi 0, %s142
      %s159 = sphi 0, %s143
      %s165 = sphi 0, %s167
      %s168 = sphi 0, %s165
      %s169 = sphi 0, %s168
      %s185 = sphi 0, %s169
      %s191 = sphi 0, %s193
      %s194 = sphi 0, %s191
      %s195 = sphi 0, %s194
      %s211 = sphi 0, %s195
    $region4: #{tpu_custom_call.1} parent=1 // loop_header_branch
      %22 = sbr.rel (%p20) target = $region8
    $region5: #{tpu_custom_call.1} parent=1 // loop_body
      %s24 = ssub.s32 %s19, 1
      %s25 = ssub.s32 %s19, 2
      %s26 = sadd.s32 %s19, 1
      %s28 = sadd.s32 %s27, 1
      %p31 = scmp.eq.s32.totalorder %s19, 1
      %p32 = scmp.ne.s32.totalorder %s27, %s29
      %p33 = scmp.eq.s32.totalorder %s19, 0
      %p34 = por %p32, %p33
      %p35 = scmp.ne.s32.totalorder %s27, %s29
      %p36 = scmp.eq.s32.totalorder %s24, 1
      %p37 = por %p35, %p36
      %p38 = scmp.ne.s32.totalorder %s29, %s30
      %p39 = scmp.eq.s32.totalorder %s24, 0
      %p40 = por %p38, %p39
      %p41 = scmp.ne.s32.totalorder %s29, %s30
      %p42 = scmp.eq.s32.totalorder %s25, 1
      %p43 = por %p41, %p42
      %p45 = scmp.ne.s32.totalorder %s30, %s44
      %p46 = scmp.eq.s32.totalorder %s25, 0
      %p47 = por %p45, %p46
      %s49 = sadd.s32 %s48, 1
      %p52 = scmp.eq.s32.totalorder %s19, 1
      %p53 = scmp.ne.s32.totalorder %s48, %s50
      %p54 = scmp.eq.s32.totalorder %s19, 0
      %p55 = por %p53, %p54
      %p56 = scmp.ne.s32.totalorder %s48, %s50
      %p57 = scmp.eq.s32.totalorder %s24, 1
      %p58 = por %p56, %p57
      %p59 = scmp.ne.s32.totalorder %s50, %s51
      %p60 = scmp.eq.s32.totalorder %s24, 0
      %p61 = por %p59, %p60
      %p62 = scmp.ne.s32.totalorder %s50, %s51
      %p63 = scmp.eq.s32.totalorder %s25, 1
      %p64 = por %p62, %p63
      %p66 = scmp.ne.s32.totalorder %s51, %s65
      %p67 = scmp.eq.s32.totalorder %s25, 0
      %p68 = por %p66, %p67
      %s70 = sadd.s32 %s69, 1
      %p73 = scmp.eq.s32.totalorder %s19, 1
      %p74 = scmp.ne.s32.totalorder %s69, %s71
      %p75 = scmp.eq.s32.totalorder %s19, 0
      %p76 = por %p74, %p75
      %p77 = scmp.ne.s32.totalorder %s69, %s71
      %p78 = scmp.eq.s32.totalorder %s24, 1
      %p79 = por %p77, %p78
      %p80 = scmp.ne.s32.totalorder %s71, %s72
      %p81 = scmp.eq.s32.totalorder %s24, 0
      %p82 = por %p80, %p81
      %p83 = scmp.ne.s32.totalorder %s71, %s72
      %p84 = scmp.eq.s32.totalorder %s25, 1
      %p85 = por %p83, %p84
      %p87 = scmp.ne.s32.totalorder %s72, %s86
      %p88 = scmp.eq.s32.totalorder %s25, 0
      %p89 = por %p87, %p88
      %s91 = sadd.s32 %s90, 1
      %p94 = scmp.eq.s32.totalorder %s19, 1
      %p95 = scmp.ne.s32.totalorder %s90, %s92
      %p96 = scmp.eq.s32.totalorder %s19, 0
      %p97 = por %p95, %p96
      %p98 = scmp.ne.s32.totalorder %s90, %s92
      %p99 = scmp.eq.s32.totalorder %s24, 1
      %p100 = por %p98, %p99
      %p101 = scmp.ne.s32.totalorder %s92, %s93
      %p102 = scmp.eq.s32.totalorder %s24, 0
      %p103 = por %p101, %p102
      %p104 = scmp.ne.s32.totalorder %s92, %s93
      %p105 = scmp.eq.s32.totalorder %s25, 1
      %p106 = por %p104, %p105
      %p108 = scmp.ne.s32.totalorder %s93, %s107
      %p109 = scmp.eq.s32.totalorder %s25, 0
      %p110 = por %p108, %p109
      %s111 = ssub.s32 %s19, %s26
      %p112 = scmp.eq.s32.totalorder %s111, 0
      %s114 = sadd.s32 %s113, 1
      %s115 = scalar_select %p112, %s113, %s114
      %p118 = pneg %p112
      %p119 = scmp.eq.s32.totalorder %s19, 1
      %p120 = por %p118, %p119
      %p121 = scmp.ne.s32.totalorder %s113, %s116
      %p122 = scmp.eq.s32.totalorder %s19, 0
      %p123 = por %p121, %p122
      %p124 = scmp.ne.s32.totalorder %s113, %s116
      %p125 = scmp.eq.s32.totalorder %s24, 1
      %p126 = por %p124, %p125
      %p127 = scmp.ne.s32.totalorder %s116, %s117
      %p128 = scmp.eq.s32.totalorder %s24, 0
      %p129 = por %p127, %p128
      %p130 = scmp.ne.s32.totalorder %s116, %s117
      %p131 = scmp.eq.s32.totalorder %s25, 1
      %p132 = por %p130, %p131
      %p134 = scmp.ne.s32.totalorder %s117, %s133
      %p135 = scmp.eq.s32.totalorder %s25, 0
      %p136 = por %p134, %p135
      %s137 = ssub.s32 %s19, %s26
      %p138 = scmp.eq.s32.totalorder %s137, 0
      %s140 = sadd.s32 %s139, 1
      %s141 = scalar_select %p138, %s139, %s140
      %p144 = pneg %p138
      %p145 = scmp.eq.s32.totalorder %s19, 1
      %p146 = por %p144, %p145
      %p147 = scmp.ne.s32.totalorder %s139, %s142
      %p148 = scmp.eq.s32.totalorder %s19, 0
      %p149 = por %p147, %p148
      %p150 = scmp.ne.s32.totalorder %s139, %s142
      %p151 = scmp.eq.s32.totalorder %s24, 1
      %p152 = por %p150, %p151
      %p153 = scmp.ne.s32.totalorder %s142, %s143
      %p154 = scmp.eq.s32.totalorder %s24, 0
      %p155 = por %p153, %p154
      %p156 = scmp.ne.s32.totalorder %s142, %s143
      %p157 = scmp.eq.s32.totalorder %s25, 1
      %p158 = por %p156, %p157
      %p160 = scmp.ne.s32.totalorder %s143, %s159
      %p161 = scmp.eq.s32.totalorder %s25, 0
      %p162 = por %p160, %p161
      %s163 = ssub.s32 %s19, %s26
      %p164 = scmp.eq.s32.totalorder %s163, 0
      %s166 = sadd.s32 %s165, 1
      %s167 = scalar_select %p164, %s165, %s166
      %p170 = pneg %p164
      %p171 = scmp.eq.s32.totalorder %s19, 1
      %p172 = por %p170, %p171
      %p173 = scmp.ne.s32.totalorder %s165, %s168
      %p174 = scmp.eq.s32.totalorder %s19, 0
      %p175 = por %p173, %p174
      %p176 = scmp.ne.s32.totalorder %s165, %s168
      %p177 = scmp.eq.s32.totalorder %s24, 1
      %p178 = por %p176, %p177
      %p179 = scmp.ne.s32.totalorder %s168, %s169
      %p180 = scmp.eq.s32.totalorder %s24, 0
      %p181 = por %p179, %p180
      %p182 = scmp.ne.s32.totalorder %s168, %s169
      %p183 = scmp.eq.s32.totalorder %s25, 1
      %p184 = por %p182, %p183
      %p186 = scmp.ne.s32.totalorder %s169, %s185
      %p187 = scmp.eq.s32.totalorder %s25, 0
      %p188 = por %p186, %p187
      %s189 = ssub.s32 %s19, %s26
      %p190 = scmp.eq.s32.totalorder %s189, 0
      %s192 = sadd.s32 %s191, 1
      %s193 = scalar_select %p190, %s191, %s192
      %p196 = pneg %p190
      %p197 = scmp.eq.s32.totalorder %s19, 1
      %p198 = por %p196, %p197
      %p199 = scmp.ne.s32.totalorder %s191, %s194
      %p200 = scmp.eq.s32.totalorder %s19, 0
      %p201 = por %p199, %p200
      %p202 = scmp.ne.s32.totalorder %s191, %s194
      %p203 = scmp.eq.s32.totalorder %s24, 1
      %p204 = por %p202, %p203
      %p205 = scmp.ne.s32.totalorder %s194, %s195
      %p206 = scmp.eq.s32.totalorder %s24, 0
      %p207 = por %p205, %p206
      %p208 = scmp.ne.s32.totalorder %s194, %s195
      %p209 = scmp.eq.s32.totalorder %s25, 1
      %p210 = por %p208, %p209
      %p212 = scmp.ne.s32.totalorder %s195, %s211
      %p213 = scmp.eq.s32.totalorder %s25, 0
      %p214 = por %p212, %p213
      %p215 = scmp.le.s32.totalorder 1, %s19
      %p216 = scmp.lt.s32.totalorder %s19, 3
      %p217 = pnand %p215, %p216
      %p218 = pneg %p217
      // Predicated region
      $region9: #{tpu_custom_call.1} parent=5 // pred_check
        _
      $region10: #{tpu_custom_call.1} parent=5 // pred_check_branch
        %220 = sbr.rel (%p217) target = $region12
      $region11: #{tpu_custom_call.1} parent=5 // pred_region
        %s221 = ssub.s32 %s19, 1
        // Predicated region
        $region13: #{tpu_custom_call.1} parent=11 // pred_check
          %p222 = pneg %p40
        $region14: #{tpu_custom_call.1} parent=11 // pred_check_branch
          %224 = sbr.rel (%p222) target = $region16
        $region15: #{tpu_custom_call.1} parent=11 // pred_region
          %226 = vsyncadd [#allocation3], 0
          %s227 = sshll.u32 %s0, 4
          %s228 = int_to_ptr.hbm [resolvable:$true] %s227
          %s229 = sshll.u32 [#allocation2], 4
          %s230 = int_to_ptr.vmem [resolvable:$true] %s229
          %235 = dma.hbm_to_vmem [thread:$0]  %s228, 2688, %s230, [#allocation3], 384, 384, 24
        $region16: #{tpu_custom_call.1} parent=11 // pred_fallthru
          _
        // Predicated region
        $region17: #{tpu_custom_call.1} parent=11 // pred_check
          %p236 = pneg %p61
        $region18: #{tpu_custom_call.1} parent=11 // pred_check_branch
          %238 = sbr.rel (%p236) target = $region20
        $region19: #{tpu_custom_call.1} parent=11 // pred_region
          %240 = vsyncadd [#allocation6], 0
          %s241 = sshll.u32 %s1, 4
          %s242 = int_to_ptr.hbm [resolvable:$true] %s241
          %s243 = sshll.u32 [#allocation5], 4
          %s244 = int_to_ptr.vmem [resolvable:$true] %s243
          %249 = dma.hbm_to_vmem [thread:$0]  %s242, 2688, %s244, [#allocation6], 384, 384, 24
        $region20: #{tpu_custom_call.1} parent=11 // pred_fallthru
          _
        // Predicated region
        $region21: #{tpu_custom_call.1} parent=11 // pred_check
          %p250 = pneg %p82
        $region22: #{tpu_custom_call.1} parent=11 // pred_check_branch
          %252 = sbr.rel (%p250) target = $region24
        $region23: #{tpu_custom_call.1} parent=11 // pred_region
          %254 = vsyncadd [#allocation6], 0
          %s256 = sshll.u32 %s2, 4
          %s257 = int_to_ptr.hbm [resolvable:$true] %s256
          %s258 = sshll.u32 [#allocation7], 4
          %s259 = int_to_ptr.vmem [resolvable:$true] %s258
          %261 = dma.hbm_to_vmem [thread:$0]  %s257, 48, %s259, [#allocation6]
        $region24: #{tpu_custom_call.1} parent=11 // pred_fallthru
          _
        // Predicated region
        $region25: #{tpu_custom_call.1} parent=11 // pred_check
          %p262 = pneg %p103
        $region26: #{tpu_custom_call.1} parent=11 // pred_check_branch
          %264 = sbr.rel (%p262) target = $region28
        $region27: #{tpu_custom_call.1} parent=11 // pred_region
          %266 = vsyncadd [#allocation9], 0
          %s268 = sshll.u32 %s3, 4
          %s269 = int_to_ptr.hbm [resolvable:$true] %s268
          %s270 = sshll.u32 [#allocation8], 4
          %s271 = int_to_ptr.vmem [resolvable:$true] %s270
          %273 = dma.hbm_to_vmem [thread:$0]  %s269, 48, %s271, [#allocation9]
        $region28: #{tpu_custom_call.1} parent=11 // pred_fallthru
          _
      $region12: #{tpu_custom_call.1} parent=5 // pred_fallthru
        _
      %p274 = scmp.lt.s32.totalorder %s19, 2
      // Predicated region
      $region29: #{tpu_custom_call.1} parent=5 // pred_check
        %p275 = pneg %p274
      $region30: #{tpu_custom_call.1} parent=5 // pred_check_branch
        %277 = sbr.rel (%p275) target = $region32
      $region31: #{tpu_custom_call.1} parent=5 // pred_region
        // Predicated region
        $region33: #{tpu_custom_call.1} parent=31 // pred_check
          %p278 = pneg %p123
        $region34: #{tpu_custom_call.1} parent=31 // pred_check_branch
          %280 = sbr.rel (%p278) target = $region36
        $region35: #{tpu_custom_call.1} parent=31 // pred_region
          %s281 = sand.u32 %s19, 1
          %s282 = scalar_lea.sflag [#allocation3], %s281
          %s283 = sand.u32 %s113, 1
          %s284 = smul.addr %s283, 1904
          %s285 = scalar_lea.vmem [#allocation10], %s284
          %s286 = smul.u32 7, %s19
          %288 = vsyncadd %s282, 0
          %s289 = smul.addr %s286, 8
          %s290 = scalar_lea.hbm %s4, %s289
          %s291 = sshll.u32 %s290, 4
          %s292 = int_to_ptr.hbm [resolvable:$true] %s291
          %s293 = sshll.u32 %s285, 4
          %s294 = int_to_ptr.vmem [resolvable:$true] %s293
          %299 = dma.hbm_to_vmem [thread:$0]  %s292, 30464, %s294, %s282, 1792, 896, 56
        $region36: #{tpu_custom_call.1} parent=31 // pred_fallthru
          _
        // Predicated region
        $region37: #{tpu_custom_call.1} parent=31 // pred_check
          %p300 = pneg %p149
        $region38: #{tpu_custom_call.1} parent=31 // pred_check_branch
          %302 = sbr.rel (%p300) target = $region40
        $region39: #{tpu_custom_call.1} parent=31 // pred_region
          %s303 = sand.u32 %s19, 1
          %s304 = scalar_lea.sflag [#allocation3], %s303
          %s305 = sand.u32 %s139, 1
          %s306 = smul.addr %s305, 7
          %s307 = scalar_lea.vmem [#allocation11], %s306
          %s308 = smul.u32 7, %s19
          %310 = vsyncadd %s304, 0
          %s311 = scalar_lea.hbm %s5, %s308
          %s313 = sshll.u32 %s311, 4
          %s314 = int_to_ptr.hbm [resolvable:$true] %s313
          %s315 = sshll.u32 %s307, 4
          %s316 = int_to_ptr.vmem [resolvable:$true] %s315
          %318 = dma.hbm_to_vmem [thread:$0]  %s314, 112, %s316, %s304
        $region40: #{tpu_custom_call.1} parent=31 // pred_fallthru
          _
        // Predicated region
        $region41: #{tpu_custom_call.1} parent=31 // pred_check
          %p319 = pneg %p175
        $region42: #{tpu_custom_call.1} parent=31 // pred_check_branch
          %321 = sbr.rel (%p319) target = $region44
        $region43: #{tpu_custom_call.1} parent=31 // pred_region
          %s322 = sand.u32 %s19, 1
          %s323 = scalar_lea.sflag [#allocation3], %s322
          %s324 = sand.u32 %s165, 1
          %s325 = smul.addr %s324, 7
          %s326 = scalar_lea.vmem [#allocation12], %s325
          %s327 = smul.u32 7, %s19
          %329 = vsyncadd %s323, 0
          %s330 = scalar_lea.hbm %s6, %s327
          %s332 = sshll.u32 %s330, 4
          %s333 = int_to_ptr.hbm [resolvable:$true] %s332
          %s334 = sshll.u32 %s326, 4
          %s335 = int_to_ptr.vmem [resolvable:$true] %s334
          %337 = dma.hbm_to_vmem [thread:$0]  %s333, 112, %s335, %s323
        $region44: #{tpu_custom_call.1} parent=31 // pred_fallthru
          _
      $region32: #{tpu_custom_call.1} parent=5 // pred_fallthru
        _
      %p338 = scmp.le.s32.totalorder 1, %s19
      %p339 = scmp.lt.s32.totalorder %s19, 3
      %p340 = pnand %p338, %p339
      %p341 = pneg %p340
      // Predicated region
      $region45: #{tpu_custom_call.1} parent=5 // pred_check
        _
      $region46: #{tpu_custom_call.1} parent=5 // pred_check_branch
        %343 = sbr.rel (%p340) target = $region48
      $region47: #{tpu_custom_call.1} parent=5 // pred_region
        %s344 = ssub.s32 %s19, 1
        // Predicated region
        $region49: #{tpu_custom_call.1} parent=47 // pred_check
          %p345 = pneg %p40
        $region50: #{tpu_custom_call.1} parent=47 // pred_check_branch
          %347 = sbr.rel (%p345) target = $region52
        $region51: #{tpu_custom_call.1} parent=47 // pred_region
          %349 = dma.done [#allocation3], 2688
        $region52: #{tpu_custom_call.1} parent=47 // pred_fallthru
          _
        // Predicated region
        $region53: #{tpu_custom_call.1} parent=47 // pred_check
          %p350 = pneg %p61
        $region54: #{tpu_custom_call.1} parent=47 // pred_check_branch
          %352 = sbr.rel (%p350) target = $region56
        $region55: #{tpu_custom_call.1} parent=47 // pred_region
          %354 = dma.done [#allocation6], 2688
        $region56: #{tpu_custom_call.1} parent=47 // pred_fallthru
          _
        // Predicated region
        $region57: #{tpu_custom_call.1} parent=47 // pred_check
          %p355 = pneg %p82
        $region58: #{tpu_custom_call.1} parent=47 // pred_check_branch
          %357 = sbr.rel (%p355) target = $region60
        $region59: #{tpu_custom_call.1} parent=47 // pred_region
          %359 = dma.done [#allocation6], 48
        $region60: #{tpu_custom_call.1} parent=47 // pred_fallthru
          _
        // Predicated region
        $region61: #{tpu_custom_call.1} parent=47 // pred_check
          %p360 = pneg %p103
        $region62: #{tpu_custom_call.1} parent=47 // pred_check_branch
          %362 = sbr.rel (%p360) target = $region64
        $region63: #{tpu_custom_call.1} parent=47 // pred_region
          %364 = dma.done [#allocation9], 48
        $region64: #{tpu_custom_call.1} parent=47 // pred_fallthru
          _
        %s365 = sand.u32 %s24, 1
        %s366 = scalar_lea.sflag [#allocation3], %s365
        %s367 = sand.u32 %s116, 1
        %s368 = smul.addr %s367, 1904
        %s369 = scalar_lea.vmem [#allocation10], %s368
        // Predicated region
        $region65: #{tpu_custom_call.1} parent=47 // pred_check
          %p370 = pneg %p129
        $region66: #{tpu_custom_call.1} parent=47 // pred_check_branch
          %372 = sbr.rel (%p370) target = $region68
        $region67: #{tpu_custom_call.1} parent=47 // pred_region
          %374 = dma.done %s366, 30464
        $region68: #{tpu_custom_call.1} parent=47 // pred_fallthru
          _
        %s375 = sand.u32 %s24, 1
        %s376 = scalar_lea.sflag [#allocation3], %s375
        %s377 = sand.u32 %s142, 1
        %s378 = smul.addr %s377, 7
        %s379 = scalar_lea.vmem [#allocation11], %s378
        // Predicated region
        $region69: #{tpu_custom_call.1} parent=47 // pred_check
          %p380 = pneg %p155
        $region70: #{tpu_custom_call.1} parent=47 // pred_check_branch
          %382 = sbr.rel (%p380) target = $region72
        $region71: #{tpu_custom_call.1} parent=47 // pred_region
          %384 = dma.done %s376, 112
        $region72: #{tpu_custom_call.1} parent=47 // pred_fallthru
          _
        %s385 = sand.u32 %s24, 1
        %s386 = scalar_lea.sflag [#allocation3], %s385
        %s387 = sand.u32 %s168, 1
        %s388 = smul.addr %s387, 7
        %s389 = scalar_lea.vmem [#allocation12], %s388
        // Predicated region
        $region73: #{tpu_custom_call.1} parent=47 // pred_check
          %p390 = pneg %p181
        $region74: #{tpu_custom_call.1} parent=47 // pred_check_branch
          %392 = sbr.rel (%p390) target = $region76
        $region75: #{tpu_custom_call.1} parent=47 // pred_region
          %394 = dma.done %s386, 112
        $region76: #{tpu_custom_call.1} parent=47 // pred_fallthru
          _
        %p395 = pneg %p40
        %p396 = pneg %p37
        %p397 = pneg %p61
        %p398 = pneg %p58
        %p399 = pneg %p82
        %p400 = pneg %p79
        %p401 = pneg %p103
        %p402 = pneg %p100
        %s403 = sand.u32 %s24, 1
        %s404 = scalar_lea.sflag [#allocation3], %s403
        %s405 = sand.u32 %s116, 1
        %s406 = smul.addr %s405, 1904
        %s407 = scalar_lea.vmem [#allocation10], %s406
        %p408 = pneg %p129
        %p409 = pneg %p126
        %s410 = sand.u32 %s24, 1
        %s411 = scalar_lea.sflag [#allocation3], %s410
        %s412 = sand.u32 %s142, 1
        %s413 = smul.addr %s412, 7
        %s414 = scalar_lea.vmem [#allocation11], %s413
        %p415 = pneg %p155
        %p416 = pneg %p152
        %s417 = sand.u32 %s24, 1
        %s418 = scalar_lea.sflag [#allocation3], %s417
        %s419 = sand.u32 %s168, 1
        %s420 = smul.addr %s419, 7
        %s421 = scalar_lea.vmem [#allocation12], %s420
        %p422 = pneg %p181
        %p423 = pneg %p178
        %p424 = pneg %p207
        %p425 = pneg %p204
        %s426 = sand.u32 %s194, 1
        %s427 = scalar_lea.sflag [#allocation4], %s426
        %s428 = sand.u32 %s194, 1
        %s429 = smul.addr %s428, 392
        %s430 = scalar_lea.vmem [#allocation13], %s429
        %s431 = smul.u32 7, %s24
        %s432 = smul.u32 7, %s24
        %s433 = smul.u32 7, %s24
        %s434 = smul.u32 7, %s24
        %v435 = vld [vmem:[#allocation2] sm:$0xff]
        %v436 = vld [vmem:[#allocation2 + $0x8] sm:$0xff]
        %v437 = vld [vmem:[#allocation2 + $0x10] sm:$0xff]
        %v438 = vld [vmem:[#allocation2 + $0x18] sm:$0xff]
        %v439 = vld [vmem:[#allocation2 + $0x20] sm:$0xff]
        %v440 = vld [vmem:[#allocation2 + $0x28] sm:$0xff]
        %v441 = vld [vmem:[#allocation2 + $0x30] sm:$0xff]
        %v442 = vld [vmem:[#allocation2 + $0x38] sm:$0xff]
        %v443 = vld [vmem:[#allocation2 + $0x40] sm:$0xff]
        %v444 = vld [vmem:[#allocation2 + $0x48] sm:$0xff]
        %v445 = vld [vmem:[#allocation2 + $0x50] sm:$0xff]
        %v446 = vld [vmem:[#allocation2 + $0x58] sm:$0xff]
        %v447 = vld [vmem:[#allocation2 + $0x60] sm:$0xff]
        %v448 = vld [vmem:[#allocation2 + $0x68] sm:$0xff]
        %v449 = vld [vmem:[#allocation2 + $0x70] sm:$0xff]
        %v450 = vld [vmem:[#allocation2 + $0x78] sm:$0xff]
        %v451 = vld [vmem:[#allocation2 + $0x80] sm:$0xff]
        %v452 = vld [vmem:[#allocation2 + $0x88] sm:$0xff]
        %v453 = vld [vmem:[#allocation2 + $0x90] sm:$0x1]
        %v454 = vld [vmem:[#allocation2 + $0x98] sm:$0x1]
        %v455 = vld [vmem:[#allocation2 + $0xa0] sm:$0x1]
        %v456 = vadd.f32 %v435, %v438
        %v457 = vadd.f32 %v456, %v441
        %v458 = vadd.f32 %v457, %v444
        %v459 = vadd.f32 %v458, %v447
        %v460 = vadd.f32 %v459, %v450
        %vm461 = vcmask 1040384
        %v462 = vsel %vm461, %v453, 0.0
        %v463 = vadd.f32 %v460, %v462
        %v464 = vrot.slane %v463, 4
        %v465 = vadd.f32 %v463, %v464
        %v466 = vrot.slane %v465, 2
        %v467 = vadd.f32 %v465, %v466
        %v468 = vrot.slane %v467, 1
        %v469 = vadd.f32 %v467, %v468
        %v470 = vadd.f32 %v436, %v439
        %v471 = vadd.f32 %v470, %v442
        %v472 = vadd.f32 %v471, %v445
        %v473 = vadd.f32 %v472, %v448
        %v474 = vadd.f32 %v473, %v451
        %v475 = vsel %vm461, %v454, 0.0
        %v476 = vadd.f32 %v474, %v475
        %v477 = vrot.slane %v476, 4
        %v478 = vadd.f32 %v476, %v477
        %v479 = vrot.slane %v478, 2
        %v480 = vadd.f32 %v478, %v479
        %v481 = vrot.slane %v480, 1
        %v482 = vadd.f32 %v480, %v481
        %vm483 = vcmask 130048
        %v484 = vsel %vm483, %v437, 0.0
        %v485 = vsel %vm483, %v440, 0.0
        %v486 = vadd.f32 %v484, %v485
        %v487 = vsel %vm483, %v443, 0.0
        %v488 = vadd.f32 %v486, %v487
        %v489 = vsel %vm483, %v446, 0.0
        %v490 = vadd.f32 %v488, %v489
        %v491 = vsel %vm483, %v449, 0.0
        %v492 = vadd.f32 %v490, %v491
        %v493 = vsel %vm483, %v452, 0.0
        %v494 = vadd.f32 %v492, %v493
        %vm495 = vcmask 122880
        %v496 = vsel %vm495, %v455, 0.0
        %v497 = vadd.f32 %v494, %v496
        %v498 = vrot.slane %v497, 4
        %v499 = vadd.f32 %v497, %v498
        %v500 = vrot.slane %v499, 2
        %v501 = vadd.f32 %v499, %v500
        %v502 = vrot.slane %v501, 1
        %v503 = vadd.f32 %v501, %v502
        %v504 = vrcp.pop 49.0
        %v505 = vmul.f32 49.0, %v504
        %v506 = vsub.f32 1.0, %v505
        %v507 = vmul.f32 %v504, %v506
        %v508 = vadd.f32 %v504, %v507
        %vm509 = vweird.f32 %v504
        %v510 = vsel %vm509, %v504, %v508
        %v511 = vmul.f32 %v469, %v510
        %v512 = vmul.f32 %v482, %v510
        %v513 = vmul.f32 %v503, %v510
        %v514 = vmul.f32 %v435, %v435
        %v515 = vmul.f32 %v436, %v436
        %v516 = vmul.f32 %v437, %v437
        %v517 = vmul.f32 %v438, %v438
        %v518 = vmul.f32 %v439, %v439
        %v519 = vmul.f32 %v440, %v440
        %v520 = vmul.f32 %v441, %v441
        %v521 = vmul.f32 %v442, %v442
        %v522 = vmul.f32 %v443, %v443
        %v523 = vmul.f32 %v444, %v444
        %v524 = vmul.f32 %v445, %v445
        %v525 = vmul.f32 %v446, %v446
        %v526 = vmul.f32 %v447, %v447
        %v527 = vmul.f32 %v448, %v448
        %v528 = vmul.f32 %v449, %v449
        %v529 = vmul.f32 %v450, %v450
        %v530 = vmul.f32 %v451, %v451
        %v531 = vmul.f32 %v452, %v452
        %v532 = vmul.f32 %v453, %v453
        %v533 = vmul.f32 %v454, %v454
        %v534 = vmul.f32 %v455, %v455
        %v535 = vadd.f32 %v514, %v517
        %v536 = vadd.f32 %v535, %v520
        %v537 = vadd.f32 %v536, %v523
        %v538 = vadd.f32 %v537, %v526
        %v539 = vadd.f32 %v538, %v529
        %v540 = vsel %vm461, %v532, 0.0
        %v541 = vadd.f32 %v539, %v540
        %v542 = vrot.slane %v541, 4
        %v543 = vadd.f32 %v541, %v542
        %v544 = vrot.slane %v543, 2
        %v545 = vadd.f32 %v543, %v544
        %v546 = vrot.slane %v545, 1
        %v547 = vadd.f32 %v545, %v546
        %v548 = vadd.f32 %v515, %v518
        %v549 = vadd.f32 %v548, %v521
        %v550 = vadd.f32 %v549, %v524
        %v551 = vadd.f32 %v550, %v527
        %v552 = vadd.f32 %v551, %v530
        %v553 = vsel %vm461, %v533, 0.0
        %v554 = vadd.f32 %v552, %v553
        %v555 = vrot.slane %v554, 4
        %v556 = vadd.f32 %v554, %v555
        %v557 = vrot.slane %v556, 2
        %v558 = vadd.f32 %v556, %v557
        %v559 = vrot.slane %v558, 1
        %v560 = vadd.f32 %v558, %v559
        %v561 = vsel %vm483, %v516, 0.0
        %v562 = vsel %vm483, %v519, 0.0
        %v563 = vadd.f32 %v561, %v562
        %v564 = vsel %vm483, %v522, 0.0
        %v565 = vadd.f32 %v563, %v564
        %v566 = vsel %vm483, %v525, 0.0
        %v567 = vadd.f32 %v565, %v566
        %v568 = vsel %vm483, %v528, 0.0
        %v569 = vadd.f32 %v567, %v568
        %v570 = vsel %vm483, %v531, 0.0
        %v571 = vadd.f32 %v569, %v570
        %v572 = vsel %vm495, %v534, 0.0
        %v573 = vadd.f32 %v571, %v572
        %v574 = vrot.slane %v573, 4
        %v575 = vadd.f32 %v573, %v574
        %v576 = vrot.slane %v575, 2
        %v577 = vadd.f32 %v575, %v576
        %v578 = vrot.slane %v577, 1
        %v579 = vadd.f32 %v577, %v578
        %v580 = vmul.f32 %v547, %v510
        %v581 = vmul.f32 %v560, %v510
        %v582 = vmul.f32 %v579, %v510
        %v583 = vmul.f32 %v511, %v511
        %v584 = vmul.f32 %v512, %v512
        %v585 = vmul.f32 %v513, %v513
        %v586 = vsub.f32 %v580, %v583
        %v587 = vsub.f32 %v581, %v584
        %v588 = vsub.f32 %v582, %v585
        %v589 = vld [vmem:[#allocation7] sm:$0x7]
        %v590 = vadd.f32 %v586, 1e-05
        %v591 = vadd.f32 %v587, 1e-05
        %v592 = vadd.f32 %v588, 1e-05
        %v593 = vrsqrt.pop %v590
        %v594 = vmul.f32 %v593, %v590
        %v595 = vmul.f32 %v594, %v593
        %v596 = vmul.f32 0.5, %v595
        %v597 = vsub.f32 1.5, %v596
        %v598 = vmul.f32 %v593, %v597
        %vm599 = vweird.f32 %v590
        %vm600 = vweird.f32 %v593
        %vm601 = vmor %vm599, %vm600
        %v602 = vsel %vm601, %v593, %v598
        %v603 = vrsqrt.pop %v591
        %v604 = vmul.f32 %v603, %v591
        %v605 = vmul.f32 %v604, %v603
        %v606 = vmul.f32 0.5, %v605
        %v607 = vsub.f32 1.5, %v606
        %v608 = vmul.f32 %v603, %v607
        %vm609 = vweird.f32 %v591
        %vm610 = vweird.f32 %v603
        %vm611 = vmor %vm609, %vm610
        %v612 = vsel %vm611, %v603, %v608
        %v613 = vrsqrt.pop %v592
        %v614 = vmul.f32 %v613, %v592
        %v615 = vmul.f32 %v614, %v613
        %v616 = vmul.f32 0.5, %v615
        %v617 = vsub.f32 1.5, %v616
        %v618 = vmul.f32 %v613, %v617
        %vm619 = vweird.f32 %v592
        %vm620 = vweird.f32 %v613
        %vm621 = vmor %vm619, %vm620
        %v622 = vsel %vm621, %v613, %v618
        %v626 = vrot.slane %v612, 7
        %v627 = vrot.slane %v622, 6
        %v628 = vsel %vm461, %v602, %v626
        %vm629 = vcmask 1041408
        %v630 = vsel %vm629, %v628, %v627
        %v632 = vmul.f32 %v589, %v630
        %v633 = vld [vmem:[#allocation8] sm:$0x7]
        %v637 = vrot.slane %v512, 7
        %v638 = vrot.slane %v513, 6
        %v639 = vsel %vm461, %v511, %v637
        %v640 = vsel %vm629, %v639, %v638
        %v642 = vmul.f32 %v632, %v640
        %v643 = vsub.f32 %v633, %v642
        %v645 = vperm.slane %v632, 0
        %v646 = vperm.slane %v632, 1
        %v647 = vperm.slane %v632, 2
        %v651 = vmul.f32 %v645, %v435
        %v652 = vmul.f32 %v646, %v436
        %v653 = vmul.f32 %v647, %v437
        %v654 = vmul.f32 %v645, %v438
        %v655 = vmul.f32 %v646, %v439
        %v656 = vmul.f32 %v647, %v440
        %v657 = vmul.f32 %v645, %v441
        %v658 = vmul.f32 %v646, %v442
        %v659 = vmul.f32 %v647, %v443
        %v660 = vmul.f32 %v645, %v444
        %v661 = vmul.f32 %v646, %v445
        %v662 = vmul.f32 %v647, %v446
        %v663 = vmul.f32 %v645, %v447
        %v664 = vmul.f32 %v646, %v448
        %v665 = vmul.f32 %v647, %v449
        %v666 = vmul.f32 %v645, %v450
        %v667 = vmul.f32 %v646, %v451
        %v668 = vmul.f32 %v647, %v452
        %v669 = vmul.f32 %v645, %v453
        %v670 = vmul.f32 %v646, %v454
        %v671 = vmul.f32 %v647, %v455
        %v673 = vperm.slane %v643, 0
        %v674 = vperm.slane %v643, 1
        %v675 = vperm.slane %v643, 2
        %v679 = vadd.f32 %v651, %v673
        %v680 = vadd.f32 %v652, %v674
        %v681 = vadd.f32 %v653, %v675
        %v682 = vadd.f32 %v654, %v673
        %v683 = vadd.f32 %v655, %v674
        %v684 = vadd.f32 %v656, %v675
        %v685 = vadd.f32 %v657, %v673
        %v686 = vadd.f32 %v658, %v674
        %v687 = vadd.f32 %v659, %v675
        %v688 = vadd.f32 %v660, %v673
        %v689 = vadd.f32 %v661, %v674
        %v690 = vadd.f32 %v662, %v675
        %v691 = vadd.f32 %v663, %v673
        %v692 = vadd.f32 %v664, %v674
        %v693 = vadd.f32 %v665, %v675
        %v694 = vadd.f32 %v666, %v673
        %v695 = vadd.f32 %v667, %v674
        %v696 = vadd.f32 %v668, %v675
        %v697 = vadd.f32 %v669, %v673
        %v698 = vadd.f32 %v670, %v674
        %v699 = vadd.f32 %v671, %v675
        %v700 = vld [vmem:[#allocation5] sm:$0xff]
        %v701 = vld [vmem:[#allocation5 + $0x8] sm:$0xff]
        %v702 = vld [vmem:[#allocation5 + $0x10] sm:$0xff]
        %v703 = vld [vmem:[#allocation5 + $0x18] sm:$0xff]
        %v704 = vld [vmem:[#allocation5 + $0x20] sm:$0xff]
        %v705 = vld [vmem:[#allocation5 + $0x28] sm:$0xff]
        %v706 = vld [vmem:[#allocation5 + $0x30] sm:$0xff]
        %v707 = vld [vmem:[#allocation5 + $0x38] sm:$0xff]
        %v708 = vld [vmem:[#allocation5 + $0x40] sm:$0xff]
        %v709 = vld [vmem:[#allocation5 + $0x48] sm:$0xff]
        %v710 = vld [vmem:[#allocation5 + $0x50] sm:$0xff]
        %v711 = vld [vmem:[#allocation5 + $0x58] sm:$0xff]
        %v712 = vld [vmem:[#allocation5 + $0x60] sm:$0xff]
        %v713 = vld [vmem:[#allocation5 + $0x68] sm:$0xff]
        %v714 = vld [vmem:[#allocation5 + $0x70] sm:$0xff]
        %v715 = vld [vmem:[#allocation5 + $0x78] sm:$0xff]
        %v716 = vld [vmem:[#allocation5 + $0x80] sm:$0xff]
        %v717 = vld [vmem:[#allocation5 + $0x88] sm:$0xff]
        %v718 = vld [vmem:[#allocation5 + $0x90] sm:$0x1]
        %v719 = vld [vmem:[#allocation5 + $0x98] sm:$0x1]
        %v720 = vld [vmem:[#allocation5 + $0xa0] sm:$0x1]
        %v721 = vadd.f32 %v679, %v700
        %v722 = vadd.f32 %v680, %v701
        %v723 = vadd.f32 %v681, %v702
        %v724 = vadd.f32 %v682, %v703
        %v725 = vadd.f32 %v683, %v704
        %v726 = vadd.f32 %v684, %v705
        %v727 = vadd.f32 %v685, %v706
        %v728 = vadd.f32 %v686, %v707
        %v729 = vadd.f32 %v687, %v708
        %v730 = vadd.f32 %v688, %v709
        %v731 = vadd.f32 %v689, %v710
        %v732 = vadd.f32 %v690, %v711
        %v733 = vadd.f32 %v691, %v712
        %v734 = vadd.f32 %v692, %v713
        %v735 = vadd.f32 %v693, %v714
        %v736 = vadd.f32 %v694, %v715
        %v737 = vadd.f32 %v695, %v716
        %v738 = vadd.f32 %v696, %v717
        %v739 = vadd.f32 %v697, %v718
        %v740 = vadd.f32 %v698, %v719
        %v741 = vadd.f32 %v699, %v720
        %v742 = vld [vmem:[%s369] sm:$0xff]
        %v743 = vld [vmem:[%s369 + $0x8] sm:$0xff]
        %v744 = vld [vmem:[%s369 + $0x10] sm:$0xff]
        %v745 = vld [vmem:[%s369 + $0x18] sm:$0xff]
        %v746 = vld [vmem:[%s369 + $0x20] sm:$0xff]
        %v747 = vld [vmem:[%s369 + $0x28] sm:$0xff]
        %v748 = vld [vmem:[%s369 + $0x30] sm:$0xff]
        %v749 = vld [vmem:[%s369 + $0x38] sm:$0xff]
        %v750 = vld [vmem:[%s369 + $0x40] sm:$0xff]
        %v751 = vld [vmem:[%s369 + $0x48] sm:$0xff]
        %v752 = vld [vmem:[%s369 + $0x50] sm:$0xff]
        %v753 = vld [vmem:[%s369 + $0x58] sm:$0xff]
        %v754 = vld [vmem:[%s369 + $0x60] sm:$0xff]
        %v755 = vld [vmem:[%s369 + $0x68] sm:$0xff]
        %v756 = vld [vmem:[%s369 + $0x70] sm:$0xff]
        %v757 = vld [vmem:[%s369 + $0x78] sm:$0xff]
        %v758 = vld [vmem:[%s369 + $0x80] sm:$0xff]
        %v759 = vld [vmem:[%s369 + $0x88] sm:$0xff]
        %v760 = vld [vmem:[%s369 + $0x90] sm:$0xff]
        %v761 = vld [vmem:[%s369 + $0x98] sm:$0xff]
        %v762 = vld [vmem:[%s369 + $0xa0] sm:$0xff]
        %v763 = vld [vmem:[%s369 + $0xa8] sm:$0xff]
        %v764 = vld [vmem:[%s369 + $0xb0] sm:$0xff]
        %v765 = vld [vmem:[%s369 + $0xb8] sm:$0xff]
        %v766 = vld [vmem:[%s369 + $0xc0] sm:$0xff]
        %v767 = vld [vmem:[%s369 + $0xc8] sm:$0xff]
        %v768 = vld [vmem:[%s369 + $0xd0] sm:$0xff]
        %v769 = vld [vmem:[%s369 + $0xd8] sm:$0xff]
        %v770 = vld [vmem:[%s369 + $0xe0] sm:$0xff]
        %v771 = vld [vmem:[%s369 + $0xe8] sm:$0xff]
        %v772 = vld [vmem:[%s369 + $0xf0] sm:$0xff]
        %v773 = vld [vmem:[%s369 + $0xf8] sm:$0xff]
        %v774 = vld [vmem:[%s369 + $0x100] sm:$0xff]
        %v775 = vld [vmem:[%s369 + $0x108] sm:$0xff]
        %v776 = vld [vmem:[%s369 + $0x110] sm:$0xff]
        %v777 = vld [vmem:[%s369 + $0x118] sm:$0xff]
        %v778 = vld [vmem:[%s369 + $0x120] sm:$0xff]
        %v779 = vld [vmem:[%s369 + $0x128] sm:$0xff]
        %v780 = vld [vmem:[%s369 + $0x130] sm:$0xff]
        %v781 = vld [vmem:[%s369 + $0x138] sm:$0xff]
        %v782 = vld [vmem:[%s369 + $0x140] sm:$0xff]
        %v783 = vld [vmem:[%s369 + $0x148] sm:$0xff]
        %v784 = vld [vmem:[%s369 + $0x150] sm:$0xff]
        %v785 = vld [vmem:[%s369 + $0x158] sm:$0xff]
        %v786 = vld [vmem:[%s369 + $0x160] sm:$0xff]
        %v787 = vld [vmem:[%s369 + $0x168] sm:$0xff]
        %v788 = vld [vmem:[%s369 + $0x170] sm:$0xff]
        %v789 = vld [vmem:[%s369 + $0x178] sm:$0xff]
        %v790 = vld [vmem:[%s369 + $0x180] sm:$0xff]
        %v791 = vld [vmem:[%s369 + $0x188] sm:$0xff]
        %v792 = vld [vmem:[%s369 + $0x190] sm:$0xff]
        %v793 = vld [vmem:[%s369 + $0x198] sm:$0xff]
        %v794 = vld [vmem:[%s369 + $0x1a0] sm:$0xff]
        %v795 = vld [vmem:[%s369 + $0x1a8] sm:$0xff]
        %v796 = vld [vmem:[%s369 + $0x1b0] sm:$0xff]
        %v797 = vld [vmem:[%s369 + $0x1b8] sm:$0xff]
        %v798 = vld [vmem:[%s369 + $0x1c0] sm:$0xff]
        %v799 = vld [vmem:[%s369 + $0x1c8] sm:$0xff]
        %v800 = vld [vmem:[%s369 + $0x1d0] sm:$0xff]
        %v801 = vld [vmem:[%s369 + $0x1d8] sm:$0xff]
        %v802 = vld [vmem:[%s369 + $0x1e0] sm:$0xff]
        %v803 = vld [vmem:[%s369 + $0x1e8] sm:$0xff]
        %v804 = vld [vmem:[%s369 + $0x1f0] sm:$0xff]
        %v805 = vld [vmem:[%s369 + $0x1f8] sm:$0xff]
        %v806 = vld [vmem:[%s369 + $0x200] sm:$0xff]
        %v807 = vld [vmem:[%s369 + $0x208] sm:$0xff]
        %v808 = vld [vmem:[%s369 + $0x210] sm:$0xff]
        %v809 = vld [vmem:[%s369 + $0x218] sm:$0xff]
        %v810 = vld [vmem:[%s369 + $0x220] sm:$0xff]
        %v811 = vld [vmem:[%s369 + $0x228] sm:$0xff]
        %v812 = vld [vmem:[%s369 + $0x230] sm:$0xff]
        %v813 = vld [vmem:[%s369 + $0x238] sm:$0xff]
        %v814 = vld [vmem:[%s369 + $0x240] sm:$0xff]
        %v815 = vld [vmem:[%s369 + $0x248] sm:$0xff]
        %v816 = vld [vmem:[%s369 + $0x250] sm:$0xff]
        %v817 = vld [vmem:[%s369 + $0x258] sm:$0xff]
        %v818 = vld [vmem:[%s369 + $0x260] sm:$0xff]
        %v819 = vld [vmem:[%s369 + $0x268] sm:$0xff]
        %v820 = vld [vmem:[%s369 + $0x270] sm:$0xff]
        %v821 = vld [vmem:[%s369 + $0x278] sm:$0xff]
        %v822 = vld [vmem:[%s369 + $0x280] sm:$0xff]
        %v823 = vld [vmem:[%s369 + $0x288] sm:$0xff]
        %v824 = vld [vmem:[%s369 + $0x290] sm:$0xff]
        %v825 = vld [vmem:[%s369 + $0x298] sm:$0xff]
        %v826 = vld [vmem:[%s369 + $0x2a0] sm:$0xff]
        %v827 = vld [vmem:[%s369 + $0x2a8] sm:$0xff]
        %v828 = vld [vmem:[%s369 + $0x2b0] sm:$0xff]
        %v829 = vld [vmem:[%s369 + $0x2b8] sm:$0xff]
        %v830 = vld [vmem:[%s369 + $0x2c0] sm:$0xff]
        %v831 = vld [vmem:[%s369 + $0x2c8] sm:$0xff]
        %v832 = vld [vmem:[%s369 + $0x2d0] sm:$0xff]
        %v833 = vld [vmem:[%s369 + $0x2d8] sm:$0xff]
        %v834 = vld [vmem:[%s369 + $0x2e0] sm:$0xff]
        %v835 = vld [vmem:[%s369 + $0x2e8] sm:$0xff]
        %v836 = vld [vmem:[%s369 + $0x2f0] sm:$0xff]
        %v837 = vld [vmem:[%s369 + $0x2f8] sm:$0xff]
        %v838 = vld [vmem:[%s369 + $0x300] sm:$0xff]
        %v839 = vld [vmem:[%s369 + $0x308] sm:$0xff]
        %v840 = vld [vmem:[%s369 + $0x310] sm:$0xff]
        %v841 = vld [vmem:[%s369 + $0x318] sm:$0xff]
        %v842 = vld [vmem:[%s369 + $0x320] sm:$0xff]
        %v843 = vld [vmem:[%s369 + $0x328] sm:$0xff]
        %v844 = vld [vmem:[%s369 + $0x330] sm:$0xff]
        %v845 = vld [vmem:[%s369 + $0x338] sm:$0xff]
        %v846 = vld [vmem:[%s369 + $0x340] sm:$0xff]
        %v847 = vld [vmem:[%s369 + $0x348] sm:$0xff]
        %v848 = vld [vmem:[%s369 + $0x350] sm:$0xff]
        %v849 = vld [vmem:[%s369 + $0x358] sm:$0xff]
        %v850 = vld [vmem:[%s369 + $0x360] sm:$0xff]
        %v851 = vld [vmem:[%s369 + $0x368] sm:$0xff]
        %v852 = vld [vmem:[%s369 + $0x370] sm:$0xff]
        %v853 = vld [vmem:[%s369 + $0x378] sm:$0xff]
        %v854 = vld [vmem:[%s369 + $0x380] sm:$0xff]
        %v855 = vld [vmem:[%s369 + $0x388] sm:$0xff]
        %v856 = vld [vmem:[%s369 + $0x390] sm:$0xff]
        %v857 = vld [vmem:[%s369 + $0x398] sm:$0xff]
        %v858 = vld [vmem:[%s369 + $0x3a0] sm:$0xff]
        %v859 = vld [vmem:[%s369 + $0x3a8] sm:$0xff]
        %v860 = vld [vmem:[%s369 + $0x3b0] sm:$0xff]
        %v861 = vld [vmem:[%s369 + $0x3b8] sm:$0xff]
        %v862 = vld [vmem:[%s369 + $0x3c0] sm:$0xff]
        %v863 = vld [vmem:[%s369 + $0x3c8] sm:$0xff]
        %v864 = vld [vmem:[%s369 + $0x3d0] sm:$0xff]
        %v865 = vld [vmem:[%s369 + $0x3d8] sm:$0xff]
        %v866 = vld [vmem:[%s369 + $0x3e0] sm:$0xff]
        %v867 = vld [vmem:[%s369 + $0x3e8] sm:$0xff]
        %v868 = vld [vmem:[%s369 + $0x3f0] sm:$0xff]
        %v869 = vld [vmem:[%s369 + $0x3f8] sm:$0xff]
        %v870 = vld [vmem:[%s369 + $0x400] sm:$0xff]
        %v871 = vld [vmem:[%s369 + $0x408] sm:$0xff]
        %v872 = vld [vmem:[%s369 + $0x410] sm:$0xff]
        %v873 = vld [vmem:[%s369 + $0x418] sm:$0xff]
        %v874 = vld [vmem:[%s369 + $0x420] sm:$0xff]
        %v875 = vld [vmem:[%s369 + $0x428] sm:$0xff]
        %v876 = vld [vmem:[%s369 + $0x430] sm:$0xff]
        %v877 = vld [vmem:[%s369 + $0x438] sm:$0xff]
        %v878 = vld [vmem:[%s369 + $0x440] sm:$0xff]
        %v879 = vld [vmem:[%s369 + $0x448] sm:$0xff]
        %v880 = vld [vmem:[%s369 + $0x450] sm:$0xff]
        %v881 = vld [vmem:[%s369 + $0x458] sm:$0xff]
        %v882 = vld [vmem:[%s369 + $0x460] sm:$0xff]
        %v883 = vld [vmem:[%s369 + $0x468] sm:$0xff]
        %v884 = vld [vmem:[%s369 + $0x470] sm:$0xff]
        %v885 = vld [vmem:[%s369 + $0x478] sm:$0xff]
        %v886 = vld [vmem:[%s369 + $0x480] sm:$0xff]
        %v887 = vld [vmem:[%s369 + $0x488] sm:$0xff]
        %v888 = vld [vmem:[%s369 + $0x490] sm:$0xff]
        %v889 = vld [vmem:[%s369 + $0x498] sm:$0xff]
        %v890 = vld [vmem:[%s369 + $0x4a0] sm:$0xff]
        %v891 = vld [vmem:[%s369 + $0x4a8] sm:$0xff]
        %v892 = vld [vmem:[%s369 + $0x4b0] sm:$0xff]
        %v893 = vld [vmem:[%s369 + $0x4b8] sm:$0xff]
        %v894 = vld [vmem:[%s369 + $0x4c0] sm:$0xff]
        %v895 = vld [vmem:[%s369 + $0x4c8] sm:$0xff]
        %v896 = vld [vmem:[%s369 + $0x4d0] sm:$0xff]
        %v897 = vld [vmem:[%s369 + $0x4d8] sm:$0xff]
        %v898 = vld [vmem:[%s369 + $0x4e0] sm:$0xff]
        %v899 = vld [vmem:[%s369 + $0x4e8] sm:$0xff]
        %v900 = vld [vmem:[%s369 + $0x4f0] sm:$0xff]
        %v901 = vld [vmem:[%s369 + $0x4f8] sm:$0xff]
        %v902 = vld [vmem:[%s369 + $0x500] sm:$0xff]
        %v903 = vld [vmem:[%s369 + $0x508] sm:$0xff]
        %v904 = vld [vmem:[%s369 + $0x510] sm:$0xff]
        %v905 = vld [vmem:[%s369 + $0x518] sm:$0xff]
        %v906 = vld [vmem:[%s369 + $0x520] sm:$0xff]
        %v907 = vld [vmem:[%s369 + $0x528] sm:$0xff]
        %v908 = vld [vmem:[%s369 + $0x530] sm:$0xff]
        %v909 = vld [vmem:[%s369 + $0x538] sm:$0xff]
        %v910 = vld [vmem:[%s369 + $0x540] sm:$0xff]
        %v911 = vld [vmem:[%s369 + $0x548] sm:$0xff]
        %v912 = vld [vmem:[%s369 + $0x550] sm:$0xff]
        %v913 = vld [vmem:[%s369 + $0x558] sm:$0xff]
        %v914 = vld [vmem:[%s369 + $0x560] sm:$0xff]
        %v915 = vld [vmem:[%s369 + $0x568] sm:$0xff]
        %v916 = vld [vmem:[%s369 + $0x570] sm:$0xff]
        %v917 = vld [vmem:[%s369 + $0x578] sm:$0xff]
        %v918 = vld [vmem:[%s369 + $0x580] sm:$0xff]
        %v919 = vld [vmem:[%s369 + $0x588] sm:$0xff]
        %v920 = vld [vmem:[%s369 + $0x590] sm:$0xff]
        %v921 = vld [vmem:[%s369 + $0x598] sm:$0xff]
        %v922 = vld [vmem:[%s369 + $0x5a0] sm:$0xff]
        %v923 = vld [vmem:[%s369 + $0x5a8] sm:$0xff]
        %v924 = vld [vmem:[%s369 + $0x5b0] sm:$0xff]
        %v925 = vld [vmem:[%s369 + $0x5b8] sm:$0xff]
        %v926 = vld [vmem:[%s369 + $0x5c0] sm:$0xff]
        %v927 = vld [vmem:[%s369 + $0x5c8] sm:$0xff]
        %v928 = vld [vmem:[%s369 + $0x5d0] sm:$0xff]
        %v929 = vld [vmem:[%s369 + $0x5d8] sm:$0xff]
        %v930 = vld [vmem:[%s369 + $0x5e0] sm:$0xff]
        %v931 = vld [vmem:[%s369 + $0x5e8] sm:$0xff]
        %v932 = vld [vmem:[%s369 + $0x5f0] sm:$0xff]
        %v933 = vld [vmem:[%s369 + $0x5f8] sm:$0xff]
        %v934 = vld [vmem:[%s369 + $0x600] sm:$0xff]
        %v935 = vld [vmem:[%s369 + $0x608] sm:$0xff]
        %v936 = vld [vmem:[%s369 + $0x610] sm:$0xff]
        %v937 = vld [vmem:[%s369 + $0x618] sm:$0xff]
        %v938 = vld [vmem:[%s369 + $0x620] sm:$0xff]
        %v939 = vld [vmem:[%s369 + $0x628] sm:$0xff]
        %v940 = vld [vmem:[%s369 + $0x630] sm:$0xff]
        %v941 = vld [vmem:[%s369 + $0x638] sm:$0xff]
        %v942 = vld [vmem:[%s369 + $0x640] sm:$0xff]
        %v943 = vld [vmem:[%s369 + $0x648] sm:$0xff]
        %v944 = vld [vmem:[%s369 + $0x650] sm:$0xff]
        %v945 = vld [vmem:[%s369 + $0x658] sm:$0xff]
        %v946 = vld [vmem:[%s369 + $0x660] sm:$0xff]
        %v947 = vld [vmem:[%s369 + $0x668] sm:$0xff]
        %v948 = vld [vmem:[%s369 + $0x670] sm:$0xff]
        %v949 = vld [vmem:[%s369 + $0x678] sm:$0xff]
        %v950 = vld [vmem:[%s369 + $0x680] sm:$0xff]
        %v951 = vld [vmem:[%s369 + $0x688] sm:$0xff]
        %v952 = vld [vmem:[%s369 + $0x690] sm:$0xff]
        %v953 = vld [vmem:[%s369 + $0x698] sm:$0xff]
        %v954 = vld [vmem:[%s369 + $0x6a0] sm:$0xff]
        %v955 = vld [vmem:[%s369 + $0x6a8] sm:$0xff]
        %v956 = vld [vmem:[%s369 + $0x6b0] sm:$0xff]
        %v957 = vld [vmem:[%s369 + $0x6b8] sm:$0xff]
        %v958 = vld [vmem:[%s369 + $0x6c0] sm:$0xff]
        %v959 = vld [vmem:[%s369 + $0x6c8] sm:$0xff]
        %v960 = vld [vmem:[%s369 + $0x6d0] sm:$0xff]
        %v961 = vld [vmem:[%s369 + $0x6d8] sm:$0xff]
        %v962 = vld [vmem:[%s369 + $0x6e0] sm:$0xff]
        %v963 = vld [vmem:[%s369 + $0x6e8] sm:$0xff]
        %v964 = vld [vmem:[%s369 + $0x6f0] sm:$0xff]
        %v965 = vld [vmem:[%s369 + $0x6f8] sm:$0xff]
        %v966 = vld [vmem:[%s369 + $0x700] sm:$0xff]
        %v967 = vld [vmem:[%s369 + $0x708] sm:$0xff]
        %v968 = vld [vmem:[%s369 + $0x710] sm:$0xff]
        %v969 = vld [vmem:[%s369 + $0x718] sm:$0xff]
        %v970 = vld [vmem:[%s369 + $0x720] sm:$0xff]
        %v971 = vld [vmem:[%s369 + $0x728] sm:$0xff]
        %v972 = vld [vmem:[%s369 + $0x730] sm:$0xff]
        %v973 = vld [vmem:[%s369 + $0x738] sm:$0xff]
        %v974 = vld [vmem:[%s369 + $0x740] sm:$0xff]
        %v975 = vld [vmem:[%s369 + $0x748] sm:$0xff]
        %v976 = vld [vmem:[%s369 + $0x750] sm:$0xff]
        %v977 = vld [vmem:[%s369 + $0x758] sm:$0xff]
        %v978 = vld [vmem:[%s369 + $0x760] sm:$0xff]
        %v979 = vld [vmem:[%s369 + $0x768] sm:$0xff]
        %v981 = vsel %vm483, %v723, 0
        %v984 = vsel %vm483, %v726, 0
        %v987 = vsel %vm483, %v729, 0
        %v990 = vsel %vm483, %v732, 0
        %v993 = vsel %vm483, %v735, 0
        %v996 = vsel %vm483, %v738, 0
        %v999 = vsel %vm483, %v741, 0
        %1001 = vmatpush.msra.mxu0 %v847
        %1002 = vmatpush.msra.mxu0 %v840
        %1003 = vmatpush.msra.mxu0 %v833
        %1004 = vmatpush.msra.mxu0 %v826
        %1005 = vmatpush.msra.mxu0 %v819
        %1006 = vmatpush.msra.mxu0 %v812
        %1007 = vmatpush.msra.mxu0 %v805
        %1008 = vmatpush.msra.mxu0 %v798
        %1009 = vmatpush.msra.mxu0 %v791
        %1010 = vmatpush.msra.mxu0 %v784
        %1011 = vmatpush.msra.mxu0 %v777
        %1012 = vmatpush.msra.mxu0 %v770
        %1013 = vmatpush.msra.mxu0 %v763
        %1014 = vmatpush.msra.mxu0 %v756
        %1015 = vmatpush.msra.mxu0 %v749
        %1016 = vmatpush.msra.mxu0 %v742
        %1017 = vmatmul.f32.gmra.mxu0 %v721
        %v1018 = vpop.f32.mrf.mxu0
        %v1019 = vadd.f32 0.0, %v1018
        %1020 = vmatmul.f32.gmra.mxu0 %v724
        %v1021 = vpop.f32.mrf.mxu0
        %v1022 = vadd.f32 0.0, %v1021
        %1023 = vmatmul.f32.gmra.mxu0 %v727
        %v1024 = vpop.f32.mrf.mxu0
        %v1025 = vadd.f32 0.0, %v1024
        %1026 = vmatmul.f32.gmra.mxu0 %v730
        %v1027 = vpop.f32.mrf.mxu0
        %v1028 = vadd.f32 0.0, %v1027
        %1029 = vmatmul.f32.gmra.mxu0 %v733
        %v1030 = vpop.f32.mrf.mxu0
        %v1031 = vadd.f32 0.0, %v1030
        %1032 = vmatmul.f32.gmra.mxu0 %v736
        %v1033 = vpop.f32.mrf.mxu0
        %v1034 = vadd.f32 0.0, %v1033
        %1035 = vmatmul.f32.gmra.mxu0 %v739
        %v1036 = vpop.f32.mrf.mxu0
        %v1037 = vadd.f32 0.0, %v1036
        %1038 = vdwg.mxu0
        %1039 = vmatpush.msra.mxu0 %v959
        %1040 = vmatpush.msra.mxu0 %v952
        %1041 = vmatpush.msra.mxu0 %v945
        %1042 = vmatpush.msra.mxu0 %v938
        %1043 = vmatpush.msra.mxu0 %v931
        %1044 = vmatpush.msra.mxu0 %v924
        %1045 = vmatpush.msra.mxu0 %v917
        %1046 = vmatpush.msra.mxu0 %v910
        %1047 = vmatpush.msra.mxu0 %v903
        %1048 = vmatpush.msra.mxu0 %v896
        %1049 = vmatpush.msra.mxu0 %v889
        %1050 = vmatpush.msra.mxu0 %v882
        %1051 = vmatpush.msra.mxu0 %v875
        %1052 = vmatpush.msra.mxu0 %v868
        %1053 = vmatpush.msra.mxu0 %v861
        %1054 = vmatpush.msra.mxu0 %v854
        %1055 = vmatmul.f32.gmra.mxu0 %v722
        %v1056 = vpop.f32.mrf.mxu0
        %v1057 = vadd.f32 %v1019, %v1056
        %1058 = vmatmul.f32.gmra.mxu0 %v725
        %v1059 = vpop.f32.mrf.mxu0
        %v1060 = vadd.f32 %v1022, %v1059
        %1061 = vmatmul.f32.gmra.mxu0 %v728
        %v1062 = vpop.f32.mrf.mxu0
        %v1063 = vadd.f32 %v1025, %v1062
        %1064 = vmatmul.f32.gmra.mxu0 %v731
        %v1065 = vpop.f32.mrf.mxu0
        %v1066 = vadd.f32 %v1028, %v1065
        %1067 = vmatmul.f32.gmra.mxu0 %v734
        %v1068 = vpop.f32.mrf.mxu0
        %v1069 = vadd.f32 %v1031, %v1068
        %1070 = vmatmul.f32.gmra.mxu0 %v737
        %v1071 = vpop.f32.mrf.mxu0
        %v1072 = vadd.f32 %v1034, %v1071
        %1073 = vmatmul.f32.gmra.mxu0 %v740
        %v1074 = vpop.f32.mrf.mxu0
        %v1075 = vadd.f32 %v1037, %v1074
        %1076 = vdwg.mxu0
        %1077 = vmatpush.msra.mxu0 0.0
        %1078 = vmatpush.msra.mxu0 0.0
        %1079 = vmatpush.msra.mxu0 0.0
        %1080 = vmatpush.msra.mxu0 0.0
        %1081 = vmatpush.msra.mxu0 0.0
        %1082 = vmatpush.msra.mxu0 0.0
        %1083 = vmatpush.msra.mxu0 0.0
        %1084 = vmatpush.msra.mxu0 0.0
        %1085 = vmatpush.msra.mxu0 0.0
        %1086 = vmatpush.msra.mxu0 0.0
        %1087 = vmatpush.msra.mxu0 0.0
        %1088 = vmatpush.msra.mxu0 0.0
        %1089 = vmatpush.msra.mxu0 0.0
        %1090 = vmatpush.msra.mxu0 0.0
        %1091 = vmatpush.msra.mxu0 %v973
        %1092 = vmatpush.msra.mxu0 %v966
        %1093 = vmatmul.f32.gmra.mxu0 %v981
        %v1094 = vpop.f32.mrf.mxu0
        %v1095 = vadd.f32 %v1057, %v1094
        %1096 = vmatmul.f32.gmra.mxu0 %v984
        %v1097 = vpop.f32.mrf.mxu0
        %v1098 = vadd.f32 %v1060, %v1097
        %1099 = vmatmul.f32.gmra.mxu0 %v987
        %v1100 = vpop.f32.mrf.mxu0
        %v1101 = vadd.f32 %v1063, %v1100
        %1102 = vmatmul.f32.gmra.mxu0 %v990
        %v1103 = vpop.f32.mrf.mxu0
        %v1104 = vadd.f32 %v1066, %v1103
        %1105 = vmatmul.f32.gmra.mxu0 %v993
        %v1106 = vpop.f32.mrf.mxu0
        %v1107 = vadd.f32 %v1069, %v1106
        %1108 = vmatmul.f32.gmra.mxu0 %v996
        %v1109 = vpop.f32.mrf.mxu0
        %v1110 = vadd.f32 %v1072, %v1109
        %1111 = vmatmul.f32.gmra.mxu0 %v999
        %v1112 = vpop.f32.mrf.mxu0
        %v1113 = vadd.f32 %v1075, %v1112
        %1114 = vdwg.mxu0
        %1115 = vmatpush.msra.mxu0 %v848
        %1116 = vmatpush.msra.mxu0 %v841
        %1117 = vmatpush.msra.mxu0 %v834
        %1118 = vmatpush.msra.mxu0 %v827
        %1119 = vmatpush.msra.mxu0 %v820
        %1120 = vmatpush.msra.mxu0 %v813
        %1121 = vmatpush.msra.mxu0 %v806
        %1122 = vmatpush.msra.mxu0 %v799
        %1123 = vmatpush.msra.mxu0 %v792
        %1124 = vmatpush.msra.mxu0 %v785
        %1125 = vmatpush.msra.mxu0 %v778
        %1126 = vmatpush.msra.mxu0 %v771
        %1127 = vmatpush.msra.mxu0 %v764
        %1128 = vmatpush.msra.mxu0 %v757
        %1129 = vmatpush.msra.mxu0 %v750
        %1130 = vmatpush.msra.mxu0 %v743
        %1131 = vmatmul.f32.gmra.mxu0 %v721
        %v1132 = vpop.f32.mrf.mxu0
        %v1133 = vadd.f32 0.0, %v1132
        %1134 = vmatmul.f32.gmra.mxu0 %v724
        %v1135 = vpop.f32.mrf.mxu0
        %v1136 = vadd.f32 0.0, %v1135
        %1137 = vmatmul.f32.gmra.mxu0 %v727
        %v1138 = vpop.f32.mrf.mxu0
        %v1139 = vadd.f32 0.0, %v1138
        %1140 = vmatmul.f32.gmra.mxu0 %v730
        %v1141 = vpop.f32.mrf.mxu0
        %v1142 = vadd.f32 0.0, %v1141
        %1143 = vmatmul.f32.gmra.mxu0 %v733
        %v1144 = vpop.f32.mrf.mxu0
        %v1145 = vadd.f32 0.0, %v1144
        %1146 = vmatmul.f32.gmra.mxu0 %v736
        %v1147 = vpop.f32.mrf.mxu0
        %v1148 = vadd.f32 0.0, %v1147
        %1149 = vmatmul.f32.gmra.mxu0 %v739
        %v1150 = vpop.f32.mrf.mxu0
        %v1151 = vadd.f32 0.0, %v1150
        %1152 = vdwg.mxu0
        %1153 = vmatpush.msra.mxu0 %v960
        %1154 = vmatpush.msra.mxu0 %v953
        %1155 = vmatpush.msra.mxu0 %v946
        %1156 = vmatpush.msra.mxu0 %v939
        %1157 = vmatpush.msra.mxu0 %v932
        %1158 = vmatpush.msra.mxu0 %v925
        %1159 = vmatpush.msra.mxu0 %v918
        %1160 = vmatpush.msra.mxu0 %v911
        %1161 = vmatpush.msra.mxu0 %v904
        %1162 = vmatpush.msra.mxu0 %v897
        %1163 = vmatpush.msra.mxu0 %v890
        %1164 = vmatpush.msra.mxu0 %v883
        %1165 = vmatpush.msra.mxu0 %v876
        %1166 = vmatpush.msra.mxu0 %v869
        %1167 = vmatpush.msra.mxu0 %v862
        %1168 = vmatpush.msra.mxu0 %v855
        %1169 = vmatmul.f32.gmra.mxu0 %v722
        %v1170 = vpop.f32.mrf.mxu0
        %v1171 = vadd.f32 %v1133, %v1170
        %1172 = vmatmul.f32.gmra.mxu0 %v725
        %v1173 = vpop.f32.mrf.mxu0
        %v1174 = vadd.f32 %v1136, %v1173
        %1175 = vmatmul.f32.gmra.mxu0 %v728
        %v1176 = vpop.f32.mrf.mxu0
        %v1177 = vadd.f32 %v1139, %v1176
        %1178 = vmatmul.f32.gmra.mxu0 %v731
        %v1179 = vpop.f32.mrf.mxu0
        %v1180 = vadd.f32 %v1142, %v1179
        %1181 = vmatmul.f32.gmra.mxu0 %v734
        %v1182 = vpop.f32.mrf.mxu0
        %v1183 = vadd.f32 %v1145, %v1182
        %1184 = vmatmul.f32.gmra.mxu0 %v737
        %v1185 = vpop.f32.mrf.mxu0
        %v1186 = vadd.f32 %v1148, %v1185
        %1187 = vmatmul.f32.gmra.mxu0 %v740
        %v1188 = vpop.f32.mrf.mxu0
        %v1189 = vadd.f32 %v1151, %v1188
        %1190 = vdwg.mxu0
        %1191 = vmatpush.msra.mxu0 0.0
        %1192 = vmatpush.msra.mxu0 0.0
        %1193 = vmatpush.msra.mxu0 0.0
        %1194 = vmatpush.msra.mxu0 0.0
        %1195 = vmatpush.msra.mxu0 0.0
        %1196 = vmatpush.msra.mxu0 0.0
        %1197 = vmatpush.msra.mxu0 0.0
        %1198 = vmatpush.msra.mxu0 0.0
        %1199 = vmatpush.msra.mxu0 0.0
        %1200 = vmatpush.msra.mxu0 0.0
        %1201 = vmatpush.msra.mxu0 0.0
        %1202 = vmatpush.msra.mxu0 0.0
        %1203 = vmatpush.msra.mxu0 0.0
        %1204 = vmatpush.msra.mxu0 0.0
        %1205 = vmatpush.msra.mxu0 %v974
        %1206 = vmatpush.msra.mxu0 %v967
        %1207 = vmatmul.f32.gmra.mxu0 %v981
        %v1208 = vpop.f32.mrf.mxu0
        %v1209 = vadd.f32 %v1171, %v1208
        %1210 = vmatmul.f32.gmra.mxu0 %v984
        %v1211 = vpop.f32.mrf.mxu0
        %v1212 = vadd.f32 %v1174, %v1211
        %1213 = vmatmul.f32.gmra.mxu0 %v987
        %v1214 = vpop.f32.mrf.mxu0
        %v1215 = vadd.f32 %v1177, %v1214
        %1216 = vmatmul.f32.gmra.mxu0 %v990
        %v1217 = vpop.f32.mrf.mxu0
        %v1218 = vadd.f32 %v1180, %v1217
        %1219 = vmatmul.f32.gmra.mxu0 %v993
        %v1220 = vpop.f32.mrf.mxu0
        %v1221 = vadd.f32 %v1183, %v1220
        %1222 = vmatmul.f32.gmra.mxu0 %v996
        %v1223 = vpop.f32.mrf.mxu0
        %v1224 = vadd.f32 %v1186, %v1223
        %1225 = vmatmul.f32.gmra.mxu0 %v999
        %v1226 = vpop.f32.mrf.mxu0
        %v1227 = vadd.f32 %v1189, %v1226
        %1228 = vdwg.mxu0
        %1229 = vmatpush.msra.mxu0 %v849
        %1230 = vmatpush.msra.mxu0 %v842
        %1231 = vmatpush.msra.mxu0 %v835
        %1232 = vmatpush.msra.mxu0 %v828
        %1233 = vmatpush.msra.mxu0 %v821
        %1234 = vmatpush.msra.mxu0 %v814
        %1235 = vmatpush.msra.mxu0 %v807
        %1236 = vmatpush.msra.mxu0 %v800
        %1237 = vmatpush.msra.mxu0 %v793
        %1238 = vmatpush.msra.mxu0 %v786
        %1239 = vmatpush.msra.mxu0 %v779
        %1240 = vmatpush.msra.mxu0 %v772
        %1241 = vmatpush.msra.mxu0 %v765
        %1242 = vmatpush.msra.mxu0 %v758
        %1243 = vmatpush.msra.mxu0 %v751
        %1244 = vmatpush.msra.mxu0 %v744
        %1245 = vmatmul.f32.gmra.mxu0 %v721
        %v1246 = vpop.f32.mrf.mxu0
        %v1247 = vadd.f32 0.0, %v1246
        %1248 = vmatmul.f32.gmra.mxu0 %v724
        %v1249 = vpop.f32.mrf.mxu0
        %v1250 = vadd.f32 0.0, %v1249
        %1251 = vmatmul.f32.gmra.mxu0 %v727
        %v1252 = vpop.f32.mrf.mxu0
        %v1253 = vadd.f32 0.0, %v1252
        %1254 = vmatmul.f32.gmra.mxu0 %v730
        %v1255 = vpop.f32.mrf.mxu0
        %v1256 = vadd.f32 0.0, %v1255
        %1257 = vmatmul.f32.gmra.mxu0 %v733
        %v1258 = vpop.f32.mrf.mxu0
        %v1259 = vadd.f32 0.0, %v1258
        %1260 = vmatmul.f32.gmra.mxu0 %v736
        %v1261 = vpop.f32.mrf.mxu0
        %v1262 = vadd.f32 0.0, %v1261
        %1263 = vmatmul.f32.gmra.mxu0 %v739
        %v1264 = vpop.f32.mrf.mxu0
        %v1265 = vadd.f32 0.0, %v1264
        %1266 = vdwg.mxu0
        %1267 = vmatpush.msra.mxu0 %v961
        %1268 = vmatpush.msra.mxu0 %v954
        %1269 = vmatpush.msra.mxu0 %v947
        %1270 = vmatpush.msra.mxu0 %v940
        %1271 = vmatpush.msra.mxu0 %v933
        %1272 = vmatpush.msra.mxu0 %v926
        %1273 = vmatpush.msra.mxu0 %v919
        %1274 = vmatpush.msra.mxu0 %v912
        %1275 = vmatpush.msra.mxu0 %v905
        %1276 = vmatpush.msra.mxu0 %v898
        %1277 = vmatpush.msra.mxu0 %v891
        %1278 = vmatpush.msra.mxu0 %v884
        %1279 = vmatpush.msra.mxu0 %v877
        %1280 = vmatpush.msra.mxu0 %v870
        %1281 = vmatpush.msra.mxu0 %v863
        %1282 = vmatpush.msra.mxu0 %v856
        %1283 = vmatmul.f32.gmra.mxu0 %v722
        %v1284 = vpop.f32.mrf.mxu0
        %v1285 = vadd.f32 %v1247, %v1284
        %1286 = vmatmul.f32.gmra.mxu0 %v725
        %v1287 = vpop.f32.mrf.mxu0
        %v1288 = vadd.f32 %v1250, %v1287
        %1289 = vmatmul.f32.gmra.mxu0 %v728
        %v1290 = vpop.f32.mrf.mxu0
        %v1291 = vadd.f32 %v1253, %v1290
        %1292 = vmatmul.f32.gmra.mxu0 %v731
        %v1293 = vpop.f32.mrf.mxu0
        %v1294 = vadd.f32 %v1256, %v1293
        %1295 = vmatmul.f32.gmra.mxu0 %v734
        %v1296 = vpop.f32.mrf.mxu0
        %v1297 = vadd.f32 %v1259, %v1296
        %1298 = vmatmul.f32.gmra.mxu0 %v737
        %v1299 = vpop.f32.mrf.mxu0
        %v1300 = vadd.f32 %v1262, %v1299
        %1301 = vmatmul.f32.gmra.mxu0 %v740
        %v1302 = vpop.f32.mrf.mxu0
        %v1303 = vadd.f32 %v1265, %v1302
        %1304 = vdwg.mxu0
        %1305 = vmatpush.msra.mxu0 0.0
        %1306 = vmatpush.msra.mxu0 0.0
        %1307 = vmatpush.msra.mxu0 0.0
        %1308 = vmatpush.msra.mxu0 0.0
        %1309 = vmatpush.msra.mxu0 0.0
        %1310 = vmatpush.msra.mxu0 0.0
        %1311 = vmatpush.msra.mxu0 0.0
        %1312 = vmatpush.msra.mxu0 0.0
        %1313 = vmatpush.msra.mxu0 0.0
        %1314 = vmatpush.msra.mxu0 0.0
        %1315 = vmatpush.msra.mxu0 0.0
        %1316 = vmatpush.msra.mxu0 0.0
        %1317 = vmatpush.msra.mxu0 0.0
        %1318 = vmatpush.msra.mxu0 0.0
        %1319 = vmatpush.msra.mxu0 %v975
        %1320 = vmatpush.msra.mxu0 %v968
        %1321 = vmatmul.f32.gmra.mxu0 %v981
        %v1322 = vpop.f32.mrf.mxu0
        %v1323 = vadd.f32 %v1285, %v1322
        %1324 = vmatmul.f32.gmra.mxu0 %v984
        %v1325 = vpop.f32.mrf.mxu0
        %v1326 = vadd.f32 %v1288, %v1325
        %1327 = vmatmul.f32.gmra.mxu0 %v987
        %v1328 = vpop.f32.mrf.mxu0
        %v1329 = vadd.f32 %v1291, %v1328
        %1330 = vmatmul.f32.gmra.mxu0 %v990
        %v1331 = vpop.f32.mrf.mxu0
        %v1332 = vadd.f32 %v1294, %v1331
        %1333 = vmatmul.f32.gmra.mxu0 %v993
        %v1334 = vpop.f32.mrf.mxu0
        %v1335 = vadd.f32 %v1297, %v1334
        %1336 = vmatmul.f32.gmra.mxu0 %v996
        %v1337 = vpop.f32.mrf.mxu0
        %v1338 = vadd.f32 %v1300, %v1337
        %1339 = vmatmul.f32.gmra.mxu0 %v999
        %v1340 = vpop.f32.mrf.mxu0
        %v1341 = vadd.f32 %v1303, %v1340
        %1342 = vdwg.mxu0
        %1343 = vmatpush.msra.mxu0 %v850
        %1344 = vmatpush.msra.mxu0 %v843
        %1345 = vmatpush.msra.mxu0 %v836
        %1346 = vmatpush.msra.mxu0 %v829
        %1347 = vmatpush.msra.mxu0 %v822
        %1348 = vmatpush.msra.mxu0 %v815
        %1349 = vmatpush.msra.mxu0 %v808
        %1350 = vmatpush.msra.mxu0 %v801
        %1351 = vmatpush.msra.mxu0 %v794
        %1352 = vmatpush.msra.mxu0 %v787
        %1353 = vmatpush.msra.mxu0 %v780
        %1354 = vmatpush.msra.mxu0 %v773
        %1355 = vmatpush.msra.mxu0 %v766
        %1356 = vmatpush.msra.mxu0 %v759
        %1357 = vmatpush.msra.mxu0 %v752
        %1358 = vmatpush.msra.mxu0 %v745
        %1359 = vmatmul.f32.gmra.mxu0 %v721
        %v1360 = vpop.f32.mrf.mxu0
        %v1361 = vadd.f32 0.0, %v1360
        %1362 = vmatmul.f32.gmra.mxu0 %v724
        %v1363 = vpop.f32.mrf.mxu0
        %v1364 = vadd.f32 0.0, %v1363
        %1365 = vmatmul.f32.gmra.mxu0 %v727
        %v1366 = vpop.f32.mrf.mxu0
        %v1367 = vadd.f32 0.0, %v1366
        %1368 = vmatmul.f32.gmra.mxu0 %v730
        %v1369 = vpop.f32.mrf.mxu0
        %v1370 = vadd.f32 0.0, %v1369
        %1371 = vmatmul.f32.gmra.mxu0 %v733
        %v1372 = vpop.f32.mrf.mxu0
        %v1373 = vadd.f32 0.0, %v1372
        %1374 = vmatmul.f32.gmra.mxu0 %v736
        %v1375 = vpop.f32.mrf.mxu0
        %v1376 = vadd.f32 0.0, %v1375
        %1377 = vmatmul.f32.gmra.mxu0 %v739
        %v1378 = vpop.f32.mrf.mxu0
        %v1379 = vadd.f32 0.0, %v1378
        %1380 = vdwg.mxu0
        %1381 = vmatpush.msra.mxu0 %v962
        %1382 = vmatpush.msra.mxu0 %v955
        %1383 = vmatpush.msra.mxu0 %v948
        %1384 = vmatpush.msra.mxu0 %v941
        %1385 = vmatpush.msra.mxu0 %v934
        %1386 = vmatpush.msra.mxu0 %v927
        %1387 = vmatpush.msra.mxu0 %v920
        %1388 = vmatpush.msra.mxu0 %v913
        %1389 = vmatpush.msra.mxu0 %v906
        %1390 = vmatpush.msra.mxu0 %v899
        %1391 = vmatpush.msra.mxu0 %v892
        %1392 = vmatpush.msra.mxu0 %v885
        %1393 = vmatpush.msra.mxu0 %v878
        %1394 = vmatpush.msra.mxu0 %v871
        %1395 = vmatpush.msra.mxu0 %v864
        %1396 = vmatpush.msra.mxu0 %v857
        %1397 = vmatmul.f32.gmra.mxu0 %v722
        %v1398 = vpop.f32.mrf.mxu0
        %v1399 = vadd.f32 %v1361, %v1398
        %1400 = vmatmul.f32.gmra.mxu0 %v725
        %v1401 = vpop.f32.mrf.mxu0
        %v1402 = vadd.f32 %v1364, %v1401
        %1403 = vmatmul.f32.gmra.mxu0 %v728
        %v1404 = vpop.f32.mrf.mxu0
        %v1405 = vadd.f32 %v1367, %v1404
        %1406 = vmatmul.f32.gmra.mxu0 %v731
        %v1407 = vpop.f32.mrf.mxu0
        %v1408 = vadd.f32 %v1370, %v1407
        %1409 = vmatmul.f32.gmra.mxu0 %v734
        %v1410 = vpop.f32.mrf.mxu0
        %v1411 = vadd.f32 %v1373, %v1410
        %1412 = vmatmul.f32.gmra.mxu0 %v737
        %v1413 = vpop.f32.mrf.mxu0
        %v1414 = vadd.f32 %v1376, %v1413
        %1415 = vmatmul.f32.gmra.mxu0 %v740
        %v1416 = vpop.f32.mrf.mxu0
        %v1417 = vadd.f32 %v1379, %v1416
        %1418 = vdwg.mxu0
        %1419 = vmatpush.msra.mxu0 0.0
        %1420 = vmatpush.msra.mxu0 0.0
        %1421 = vmatpush.msra.mxu0 0.0
        %1422 = vmatpush.msra.mxu0 0.0
        %1423 = vmatpush.msra.mxu0 0.0
        %1424 = vmatpush.msra.mxu0 0.0
        %1425 = vmatpush.msra.mxu0 0.0
        %1426 = vmatpush.msra.mxu0 0.0
        %1427 = vmatpush.msra.mxu0 0.0
        %1428 = vmatpush.msra.mxu0 0.0
        %1429 = vmatpush.msra.mxu0 0.0
        %1430 = vmatpush.msra.mxu0 0.0
        %1431 = vmatpush.msra.mxu0 0.0
        %1432 = vmatpush.msra.mxu0 0.0
        %1433 = vmatpush.msra.mxu0 %v976
        %1434 = vmatpush.msra.mxu0 %v969
        %1435 = vmatmul.f32.gmra.mxu0 %v981
        %v1436 = vpop.f32.mrf.mxu0
        %v1437 = vadd.f32 %v1399, %v1436
        %1438 = vmatmul.f32.gmra.mxu0 %v984
        %v1439 = vpop.f32.mrf.mxu0
        %v1440 = vadd.f32 %v1402, %v1439
        %1441 = vmatmul.f32.gmra.mxu0 %v987
        %v1442 = vpop.f32.mrf.mxu0
        %v1443 = vadd.f32 %v1405, %v1442
        %1444 = vmatmul.f32.gmra.mxu0 %v990
        %v1445 = vpop.f32.mrf.mxu0
        %v1446 = vadd.f32 %v1408, %v1445
        %1447 = vmatmul.f32.gmra.mxu0 %v993
        %v1448 = vpop.f32.mrf.mxu0
        %v1449 = vadd.f32 %v1411, %v1448
        %1450 = vmatmul.f32.gmra.mxu0 %v996
        %v1451 = vpop.f32.mrf.mxu0
        %v1452 = vadd.f32 %v1414, %v1451
        %1453 = vmatmul.f32.gmra.mxu0 %v999
        %v1454 = vpop.f32.mrf.mxu0
        %v1455 = vadd.f32 %v1417, %v1454
        %1456 = vdwg.mxu0
        %1457 = vmatpush.msra.mxu0 %v851
        %1458 = vmatpush.msra.mxu0 %v844
        %1459 = vmatpush.msra.mxu0 %v837
        %1460 = vmatpush.msra.mxu0 %v830
        %1461 = vmatpush.msra.mxu0 %v823
        %1462 = vmatpush.msra.mxu0 %v816
        %1463 = vmatpush.msra.mxu0 %v809
        %1464 = vmatpush.msra.mxu0 %v802
        %1465 = vmatpush.msra.mxu0 %v795
        %1466 = vmatpush.msra.mxu0 %v788
        %1467 = vmatpush.msra.mxu0 %v781
        %1468 = vmatpush.msra.mxu0 %v774
        %1469 = vmatpush.msra.mxu0 %v767
        %1470 = vmatpush.msra.mxu0 %v760
        %1471 = vmatpush.msra.mxu0 %v753
        %1472 = vmatpush.msra.mxu0 %v746
        %1473 = vmatmul.f32.gmra.mxu0 %v721
        %v1474 = vpop.f32.mrf.mxu0
        %v1475 = vadd.f32 0.0, %v1474
        %1476 = vmatmul.f32.gmra.mxu0 %v724
        %v1477 = vpop.f32.mrf.mxu0
        %v1478 = vadd.f32 0.0, %v1477
        %1479 = vmatmul.f32.gmra.mxu0 %v727
        %v1480 = vpop.f32.mrf.mxu0
        %v1481 = vadd.f32 0.0, %v1480
        %1482 = vmatmul.f32.gmra.mxu0 %v730
        %v1483 = vpop.f32.mrf.mxu0
        %v1484 = vadd.f32 0.0, %v1483
        %1485 = vmatmul.f32.gmra.mxu0 %v733
        %v1486 = vpop.f32.mrf.mxu0
        %v1487 = vadd.f32 0.0, %v1486
        %1488 = vmatmul.f32.gmra.mxu0 %v736
        %v1489 = vpop.f32.mrf.mxu0
        %v1490 = vadd.f32 0.0, %v1489
        %1491 = vmatmul.f32.gmra.mxu0 %v739
        %v1492 = vpop.f32.mrf.mxu0
        %v1493 = vadd.f32 0.0, %v1492
        %1494 = vdwg.mxu0
        %1495 = vmatpush.msra.mxu0 %v963
        %1496 = vmatpush.msra.mxu0 %v956
        %1497 = vmatpush.msra.mxu0 %v949
        %1498 = vmatpush.msra.mxu0 %v942
        %1499 = vmatpush.msra.mxu0 %v935
        %1500 = vmatpush.msra.mxu0 %v928
        %1501 = vmatpush.msra.mxu0 %v921
        %1502 = vmatpush.msra.mxu0 %v914
        %1503 = vmatpush.msra.mxu0 %v907
        %1504 = vmatpush.msra.mxu0 %v900
        %1505 = vmatpush.msra.mxu0 %v893
        %1506 = vmatpush.msra.mxu0 %v886
        %1507 = vmatpush.msra.mxu0 %v879
        %1508 = vmatpush.msra.mxu0 %v872
        %1509 = vmatpush.msra.mxu0 %v865
        %1510 = vmatpush.msra.mxu0 %v858
        %1511 = vmatmul.f32.gmra.mxu0 %v722
        %v1512 = vpop.f32.mrf.mxu0
        %v1513 = vadd.f32 %v1475, %v1512
        %1514 = vmatmul.f32.gmra.mxu0 %v725
        %v1515 = vpop.f32.mrf.mxu0
        %v1516 = vadd.f32 %v1478, %v1515
        %1517 = vmatmul.f32.gmra.mxu0 %v728
        %v1518 = vpop.f32.mrf.mxu0
        %v1519 = vadd.f32 %v1481, %v1518
        %1520 = vmatmul.f32.gmra.mxu0 %v731
        %v1521 = vpop.f32.mrf.mxu0
        %v1522 = vadd.f32 %v1484, %v1521
        %1523 = vmatmul.f32.gmra.mxu0 %v734
        %v1524 = vpop.f32.mrf.mxu0
        %v1525 = vadd.f32 %v1487, %v1524
        %1526 = vmatmul.f32.gmra.mxu0 %v737
        %v1527 = vpop.f32.mrf.mxu0
        %v1528 = vadd.f32 %v1490, %v1527
        %1529 = vmatmul.f32.gmra.mxu0 %v740
        %v1530 = vpop.f32.mrf.mxu0
        %v1531 = vadd.f32 %v1493, %v1530
        %1532 = vdwg.mxu0
        %1533 = vmatpush.msra.mxu0 0.0
        %1534 = vmatpush.msra.mxu0 0.0
        %1535 = vmatpush.msra.mxu0 0.0
        %1536 = vmatpush.msra.mxu0 0.0
        %1537 = vmatpush.msra.mxu0 0.0
        %1538 = vmatpush.msra.mxu0 0.0
        %1539 = vmatpush.msra.mxu0 0.0
        %1540 = vmatpush.msra.mxu0 0.0
        %1541 = vmatpush.msra.mxu0 0.0
        %1542 = vmatpush.msra.mxu0 0.0
        %1543 = vmatpush.msra.mxu0 0.0
        %1544 = vmatpush.msra.mxu0 0.0
        %1545 = vmatpush.msra.mxu0 0.0
        %1546 = vmatpush.msra.mxu0 0.0
        %1547 = vmatpush.msra.mxu0 %v977
        %1548 = vmatpush.msra.mxu0 %v970
        %1549 = vmatmul.f32.gmra.mxu0 %v981
        %v1550 = vpop.f32.mrf.mxu0
        %v1551 = vadd.f32 %v1513, %v1550
        %1552 = vmatmul.f32.gmra.mxu0 %v984
        %v1553 = vpop.f32.mrf.mxu0
        %v1554 = vadd.f32 %v1516, %v1553
        %1555 = vmatmul.f32.gmra.mxu0 %v987
        %v1556 = vpop.f32.mrf.mxu0
        %v1557 = vadd.f32 %v1519, %v1556
        %1558 = vmatmul.f32.gmra.mxu0 %v990
        %v1559 = vpop.f32.mrf.mxu0
        %v1560 = vadd.f32 %v1522, %v1559
        %1561 = vmatmul.f32.gmra.mxu0 %v993
        %v1562 = vpop.f32.mrf.mxu0
        %v1563 = vadd.f32 %v1525, %v1562
        %1564 = vmatmul.f32.gmra.mxu0 %v996
        %v1565 = vpop.f32.mrf.mxu0
        %v1566 = vadd.f32 %v1528, %v1565
        %1567 = vmatmul.f32.gmra.mxu0 %v999
        %v1568 = vpop.f32.mrf.mxu0
        %v1569 = vadd.f32 %v1531, %v1568
        %1570 = vdwg.mxu0
        %1571 = vmatpush.msra.mxu0 %v852
        %1572 = vmatpush.msra.mxu0 %v845
        %1573 = vmatpush.msra.mxu0 %v838
        %1574 = vmatpush.msra.mxu0 %v831
        %1575 = vmatpush.msra.mxu0 %v824
        %1576 = vmatpush.msra.mxu0 %v817
        %1577 = vmatpush.msra.mxu0 %v810
        %1578 = vmatpush.msra.mxu0 %v803
        %1579 = vmatpush.msra.mxu0 %v796
        %1580 = vmatpush.msra.mxu0 %v789
        %1581 = vmatpush.msra.mxu0 %v782
        %1582 = vmatpush.msra.mxu0 %v775
        %1583 = vmatpush.msra.mxu0 %v768
        %1584 = vmatpush.msra.mxu0 %v761
        %1585 = vmatpush.msra.mxu0 %v754
        %1586 = vmatpush.msra.mxu0 %v747
        %1587 = vmatmul.f32.gmra.mxu0 %v721
        %v1588 = vpop.f32.mrf.mxu0
        %v1589 = vadd.f32 0.0, %v1588
        %1590 = vmatmul.f32.gmra.mxu0 %v724
        %v1591 = vpop.f32.mrf.mxu0
        %v1592 = vadd.f32 0.0, %v1591
        %1593 = vmatmul.f32.gmra.mxu0 %v727
        %v1594 = vpop.f32.mrf.mxu0
        %v1595 = vadd.f32 0.0, %v1594
        %1596 = vmatmul.f32.gmra.mxu0 %v730
        %v1597 = vpop.f32.mrf.mxu0
        %v1598 = vadd.f32 0.0, %v1597
        %1599 = vmatmul.f32.gmra.mxu0 %v733
        %v1600 = vpop.f32.mrf.mxu0
        %v1601 = vadd.f32 0.0, %v1600
        %1602 = vmatmul.f32.gmra.mxu0 %v736
        %v1603 = vpop.f32.mrf.mxu0
        %v1604 = vadd.f32 0.0, %v1603
        %1605 = vmatmul.f32.gmra.mxu0 %v739
        %v1606 = vpop.f32.mrf.mxu0
        %v1607 = vadd.f32 0.0, %v1606
        %1608 = vdwg.mxu0
        %1609 = vmatpush.msra.mxu0 %v964
        %1610 = vmatpush.msra.mxu0 %v957
        %1611 = vmatpush.msra.mxu0 %v950
        %1612 = vmatpush.msra.mxu0 %v943
        %1613 = vmatpush.msra.mxu0 %v936
        %1614 = vmatpush.msra.mxu0 %v929
        %1615 = vmatpush.msra.mxu0 %v922
        %1616 = vmatpush.msra.mxu0 %v915
        %1617 = vmatpush.msra.mxu0 %v908
        %1618 = vmatpush.msra.mxu0 %v901
        %1619 = vmatpush.msra.mxu0 %v894
        %1620 = vmatpush.msra.mxu0 %v887
        %1621 = vmatpush.msra.mxu0 %v880
        %1622 = vmatpush.msra.mxu0 %v873
        %1623 = vmatpush.msra.mxu0 %v866
        %1624 = vmatpush.msra.mxu0 %v859
        %1625 = vmatmul.f32.gmra.mxu0 %v722
        %v1626 = vpop.f32.mrf.mxu0
        %v1627 = vadd.f32 %v1589, %v1626
        %1628 = vmatmul.f32.gmra.mxu0 %v725
        %v1629 = vpop.f32.mrf.mxu0
        %v1630 = vadd.f32 %v1592, %v1629
        %1631 = vmatmul.f32.gmra.mxu0 %v728
        %v1632 = vpop.f32.mrf.mxu0
        %v1633 = vadd.f32 %v1595, %v1632
        %1634 = vmatmul.f32.gmra.mxu0 %v731
        %v1635 = vpop.f32.mrf.mxu0
        %v1636 = vadd.f32 %v1598, %v1635
        %1637 = vmatmul.f32.gmra.mxu0 %v734
        %v1638 = vpop.f32.mrf.mxu0
        %v1639 = vadd.f32 %v1601, %v1638
        %1640 = vmatmul.f32.gmra.mxu0 %v737
        %v1641 = vpop.f32.mrf.mxu0
        %v1642 = vadd.f32 %v1604, %v1641
        %1643 = vmatmul.f32.gmra.mxu0 %v740
        %v1644 = vpop.f32.mrf.mxu0
        %v1645 = vadd.f32 %v1607, %v1644
        %1646 = vdwg.mxu0
        %1647 = vmatpush.msra.mxu0 0.0
        %1648 = vmatpush.msra.mxu0 0.0
        %1649 = vmatpush.msra.mxu0 0.0
        %1650 = vmatpush.msra.mxu0 0.0
        %1651 = vmatpush.msra.mxu0 0.0
        %1652 = vmatpush.msra.mxu0 0.0
        %1653 = vmatpush.msra.mxu0 0.0
        %1654 = vmatpush.msra.mxu0 0.0
        %1655 = vmatpush.msra.mxu0 0.0
        %1656 = vmatpush.msra.mxu0 0.0
        %1657 = vmatpush.msra.mxu0 0.0
        %1658 = vmatpush.msra.mxu0 0.0
        %1659 = vmatpush.msra.mxu0 0.0
        %1660 = vmatpush.msra.mxu0 0.0
        %1661 = vmatpush.msra.mxu0 %v978
        %1662 = vmatpush.msra.mxu0 %v971
        %1663 = vmatmul.f32.gmra.mxu0 %v981
        %v1664 = vpop.f32.mrf.mxu0
        %v1665 = vadd.f32 %v1627, %v1664
        %1666 = vmatmul.f32.gmra.mxu0 %v984
        %v1667 = vpop.f32.mrf.mxu0
        %v1668 = vadd.f32 %v1630, %v1667
        %1669 = vmatmul.f32.gmra.mxu0 %v987
        %v1670 = vpop.f32.mrf.mxu0
        %v1671 = vadd.f32 %v1633, %v1670
        %1672 = vmatmul.f32.gmra.mxu0 %v990
        %v1673 = vpop.f32.mrf.mxu0
        %v1674 = vadd.f32 %v1636, %v1673
        %1675 = vmatmul.f32.gmra.mxu0 %v993
        %v1676 = vpop.f32.mrf.mxu0
        %v1677 = vadd.f32 %v1639, %v1676
        %1678 = vmatmul.f32.gmra.mxu0 %v996
        %v1679 = vpop.f32.mrf.mxu0
        %v1680 = vadd.f32 %v1642, %v1679
        %1681 = vmatmul.f32.gmra.mxu0 %v999
        %v1682 = vpop.f32.mrf.mxu0
        %v1683 = vadd.f32 %v1645, %v1682
        %1684 = vdwg.mxu0
        %1685 = vmatpush.msra.mxu0 %v853
        %1686 = vmatpush.msra.mxu0 %v846
        %1687 = vmatpush.msra.mxu0 %v839
        %1688 = vmatpush.msra.mxu0 %v832
        %1689 = vmatpush.msra.mxu0 %v825
        %1690 = vmatpush.msra.mxu0 %v818
        %1691 = vmatpush.msra.mxu0 %v811
        %1692 = vmatpush.msra.mxu0 %v804
        %1693 = vmatpush.msra.mxu0 %v797
        %1694 = vmatpush.msra.mxu0 %v790
        %1695 = vmatpush.msra.mxu0 %v783
        %1696 = vmatpush.msra.mxu0 %v776
        %1697 = vmatpush.msra.mxu0 %v769
        %1698 = vmatpush.msra.mxu0 %v762
        %1699 = vmatpush.msra.mxu0 %v755
        %1700 = vmatpush.msra.mxu0 %v748
        %1701 = vmatmul.f32.gmra.mxu0 %v721
        %v1702 = vpop.f32.mrf.mxu0
        %v1703 = vadd.f32 0.0, %v1702
        %1704 = vmatmul.f32.gmra.mxu0 %v724
        %v1705 = vpop.f32.mrf.mxu0
        %v1706 = vadd.f32 0.0, %v1705
        %1707 = vmatmul.f32.gmra.mxu0 %v727
        %v1708 = vpop.f32.mrf.mxu0
        %v1709 = vadd.f32 0.0, %v1708
        %1710 = vmatmul.f32.gmra.mxu0 %v730
        %v1711 = vpop.f32.mrf.mxu0
        %v1712 = vadd.f32 0.0, %v1711
        %1713 = vmatmul.f32.gmra.mxu0 %v733
        %v1714 = vpop.f32.mrf.mxu0
        %v1715 = vadd.f32 0.0, %v1714
        %1716 = vmatmul.f32.gmra.mxu0 %v736
        %v1717 = vpop.f32.mrf.mxu0
        %v1718 = vadd.f32 0.0, %v1717
        %1719 = vmatmul.f32.gmra.mxu0 %v739
        %v1720 = vpop.f32.mrf.mxu0
        %v1721 = vadd.f32 0.0, %v1720
        %1722 = vdwg.mxu0
        %1723 = vmatpush.msra.mxu0 %v965
        %1724 = vmatpush.msra.mxu0 %v958
        %1725 = vmatpush.msra.mxu0 %v951
        %1726 = vmatpush.msra.mxu0 %v944
        %1727 = vmatpush.msra.mxu0 %v937
        %1728 = vmatpush.msra.mxu0 %v930
        %1729 = vmatpush.msra.mxu0 %v923
        %1730 = vmatpush.msra.mxu0 %v916
        %1731 = vmatpush.msra.mxu0 %v909
        %1732 = vmatpush.msra.mxu0 %v902
        %1733 = vmatpush.msra.mxu0 %v895
        %1734 = vmatpush.msra.mxu0 %v888
        %1735 = vmatpush.msra.mxu0 %v881
        %1736 = vmatpush.msra.mxu0 %v874
        %1737 = vmatpush.msra.mxu0 %v867
        %1738 = vmatpush.msra.mxu0 %v860
        %1739 = vmatmul.f32.gmra.mxu0 %v722
        %v1740 = vpop.f32.mrf.mxu0
        %v1741 = vadd.f32 %v1703, %v1740
        %1742 = vmatmul.f32.gmra.mxu0 %v725
        %v1743 = vpop.f32.mrf.mxu0
        %v1744 = vadd.f32 %v1706, %v1743
        %1745 = vmatmul.f32.gmra.mxu0 %v728
        %v1746 = vpop.f32.mrf.mxu0
        %v1747 = vadd.f32 %v1709, %v1746
        %1748 = vmatmul.f32.gmra.mxu0 %v731
        %v1749 = vpop.f32.mrf.mxu0
        %v1750 = vadd.f32 %v1712, %v1749
        %1751 = vmatmul.f32.gmra.mxu0 %v734
        %v1752 = vpop.f32.mrf.mxu0
        %v1753 = vadd.f32 %v1715, %v1752
        %1754 = vmatmul.f32.gmra.mxu0 %v737
        %v1755 = vpop.f32.mrf.mxu0
        %v1756 = vadd.f32 %v1718, %v1755
        %1757 = vmatmul.f32.gmra.mxu0 %v740
        %v1758 = vpop.f32.mrf.mxu0
        %v1759 = vadd.f32 %v1721, %v1758
        %1760 = vdwg.mxu0
        %1761 = vmatpush.msra.mxu0 0.0
        %1762 = vmatpush.msra.mxu0 0.0
        %1763 = vmatpush.msra.mxu0 0.0
        %1764 = vmatpush.msra.mxu0 0.0
        %1765 = vmatpush.msra.mxu0 0.0
        %1766 = vmatpush.msra.mxu0 0.0
        %1767 = vmatpush.msra.mxu0 0.0
        %1768 = vmatpush.msra.mxu0 0.0
        %1769 = vmatpush.msra.mxu0 0.0
        %1770 = vmatpush.msra.mxu0 0.0
        %1771 = vmatpush.msra.mxu0 0.0
        %1772 = vmatpush.msra.mxu0 0.0
        %1773 = vmatpush.msra.mxu0 0.0
        %1774 = vmatpush.msra.mxu0 0.0
        %1775 = vmatpush.msra.mxu0 %v979
        %1776 = vmatpush.msra.mxu0 %v972
        %1777 = vmatmul.f32.gmra.mxu0 %v981
        %v1778 = vpop.f32.mrf.mxu0
        %v1779 = vadd.f32 %v1741, %v1778
        %1780 = vmatmul.f32.gmra.mxu0 %v984
        %v1781 = vpop.f32.mrf.mxu0
        %v1782 = vadd.f32 %v1744, %v1781
        %1783 = vmatmul.f32.gmra.mxu0 %v987
        %v1784 = vpop.f32.mrf.mxu0
        %v1785 = vadd.f32 %v1747, %v1784
        %1786 = vmatmul.f32.gmra.mxu0 %v990
        %v1787 = vpop.f32.mrf.mxu0
        %v1788 = vadd.f32 %v1750, %v1787
        %1789 = vmatmul.f32.gmra.mxu0 %v993
        %v1790 = vpop.f32.mrf.mxu0
        %v1791 = vadd.f32 %v1753, %v1790
        %1792 = vmatmul.f32.gmra.mxu0 %v996
        %v1793 = vpop.f32.mrf.mxu0
        %v1794 = vadd.f32 %v1756, %v1793
        %1795 = vmatmul.f32.gmra.mxu0 %v999
        %v1796 = vpop.f32.mrf.mxu0
        %v1797 = vadd.f32 %v1759, %v1796
        %1798 = vdwg.mxu0
        %v1799 = vadd.f32 %v1095, %v1098
        %v1800 = vadd.f32 %v1799, %v1101
        %v1801 = vadd.f32 %v1800, %v1104
        %v1802 = vadd.f32 %v1801, %v1107
        %v1803 = vadd.f32 %v1802, %v1110
        %v1804 = vsel %vm461, %v1113, 0.0
        %v1805 = vadd.f32 %v1803, %v1804
        %v1806 = vrot.slane %v1805, 4
        %v1807 = vadd.f32 %v1805, %v1806
        %v1808 = vrot.slane %v1807, 2
        %v1809 = vadd.f32 %v1807, %v1808
        %v1810 = vrot.slane %v1809, 1
        %v1811 = vadd.f32 %v1809, %v1810
        %v1812 = vadd.f32 %v1209, %v1212
        %v1813 = vadd.f32 %v1812, %v1215
        %v1814 = vadd.f32 %v1813, %v1218
        %v1815 = vadd.f32 %v1814, %v1221
        %v1816 = vadd.f32 %v1815, %v1224
        %v1817 = vsel %vm461, %v1227, 0.0
        %v1818 = vadd.f32 %v1816, %v1817
        %v1819 = vrot.slane %v1818, 4
        %v1820 = vadd.f32 %v1818, %v1819
        %v1821 = vrot.slane %v1820, 2
        %v1822 = vadd.f32 %v1820, %v1821
        %v1823 = vrot.slane %v1822, 1
        %v1824 = vadd.f32 %v1822, %v1823
        %v1825 = vadd.f32 %v1323, %v1326
        %v1826 = vadd.f32 %v1825, %v1329
        %v1827 = vadd.f32 %v1826, %v1332
        %v1828 = vadd.f32 %v1827, %v1335
        %v1829 = vadd.f32 %v1828, %v1338
        %v1830 = vsel %vm461, %v1341, 0.0
        %v1831 = vadd.f32 %v1829, %v1830
        %v1832 = vrot.slane %v1831, 4
        %v1833 = vadd.f32 %v1831, %v1832
        %v1834 = vrot.slane %v1833, 2
        %v1835 = vadd.f32 %v1833, %v1834
        %v1836 = vrot.slane %v1835, 1
        %v1837 = vadd.f32 %v1835, %v1836
        %v1838 = vadd.f32 %v1437, %v1440
        %v1839 = vadd.f32 %v1838, %v1443
        %v1840 = vadd.f32 %v1839, %v1446
        %v1841 = vadd.f32 %v1840, %v1449
        %v1842 = vadd.f32 %v1841, %v1452
        %v1843 = vsel %vm461, %v1455, 0.0
        %v1844 = vadd.f32 %v1842, %v1843
        %v1845 = vrot.slane %v1844, 4
        %v1846 = vadd.f32 %v1844, %v1845
        %v1847 = vrot.slane %v1846, 2
        %v1848 = vadd.f32 %v1846, %v1847
        %v1849 = vrot.slane %v1848, 1
        %v1850 = vadd.f32 %v1848, %v1849
        %v1851 = vadd.f32 %v1551, %v1554
        %v1852 = vadd.f32 %v1851, %v1557
        %v1853 = vadd.f32 %v1852, %v1560
        %v1854 = vadd.f32 %v1853, %v1563
        %v1855 = vadd.f32 %v1854, %v1566
        %v1856 = vsel %vm461, %v1569, 0.0
        %v1857 = vadd.f32 %v1855, %v1856
        %v1858 = vrot.slane %v1857, 4
        %v1859 = vadd.f32 %v1857, %v1858
        %v1860 = vrot.slane %v1859, 2
        %v1861 = vadd.f32 %v1859, %v1860
        %v1862 = vrot.slane %v1861, 1
        %v1863 = vadd.f32 %v1861, %v1862
        %v1864 = vadd.f32 %v1665, %v1668
        %v1865 = vadd.f32 %v1864, %v1671
        %v1866 = vadd.f32 %v1865, %v1674
        %v1867 = vadd.f32 %v1866, %v1677
        %v1868 = vadd.f32 %v1867, %v1680
        %v1869 = vsel %vm461, %v1683, 0.0
        %v1870 = vadd.f32 %v1868, %v1869
        %v1871 = vrot.slane %v1870, 4
        %v1872 = vadd.f32 %v1870, %v1871
        %v1873 = vrot.slane %v1872, 2
        %v1874 = vadd.f32 %v1872, %v1873
        %v1875 = vrot.slane %v1874, 1
        %v1876 = vadd.f32 %v1874, %v1875
        %v1877 = vadd.f32 %v1779, %v1782
        %v1878 = vadd.f32 %v1877, %v1785
        %v1879 = vadd.f32 %v1878, %v1788
        %v1880 = vadd.f32 %v1879, %v1791
        %v1881 = vadd.f32 %v1880, %v1794
        %v1882 = vsel %vm461, %v1797, 0.0
        %v1883 = vadd.f32 %v1881, %v1882
        %v1884 = vrot.slane %v1883, 4
        %v1885 = vadd.f32 %v1883, %v1884
        %v1886 = vrot.slane %v1885, 2
        %v1887 = vadd.f32 %v1885, %v1886
        %v1888 = vrot.slane %v1887, 1
        %v1889 = vadd.f32 %v1887, %v1888
        %v1890 = vmul.f32 %v1811, %v510
        %v1891 = vmul.f32 %v1824, %v510
        %v1892 = vmul.f32 %v1837, %v510
        %v1893 = vmul.f32 %v1850, %v510
        %v1894 = vmul.f32 %v1863, %v510
        %v1895 = vmul.f32 %v1876, %v510
        %v1896 = vmul.f32 %v1889, %v510
        %v1897 = vmul.f32 %v1095, %v1095
        %v1898 = vmul.f32 %v1209, %v1209
        %v1899 = vmul.f32 %v1323, %v1323
        %v1900 = vmul.f32 %v1437, %v1437
        %v1901 = vmul.f32 %v1551, %v1551
        %v1902 = vmul.f32 %v1665, %v1665
        %v1903 = vmul.f32 %v1779, %v1779
        %v1904 = vmul.f32 %v1098, %v1098
        %v1905 = vmul.f32 %v1212, %v1212
        %v1906 = vmul.f32 %v1326, %v1326
        %v1907 = vmul.f32 %v1440, %v1440
        %v1908 = vmul.f32 %v1554, %v1554
        %v1909 = vmul.f32 %v1668, %v1668
        %v1910 = vmul.f32 %v1782, %v1782
        %v1911 = vmul.f32 %v1101, %v1101
        %v1912 = vmul.f32 %v1215, %v1215
        %v1913 = vmul.f32 %v1329, %v1329
        %v1914 = vmul.f32 %v1443, %v1443
        %v1915 = vmul.f32 %v1557, %v1557
        %v1916 = vmul.f32 %v1671, %v1671
        %v1917 = vmul.f32 %v1785, %v1785
        %v1918 = vmul.f32 %v1104, %v1104
        %v1919 = vmul.f32 %v1218, %v1218
        %v1920 = vmul.f32 %v1332, %v1332
        %v1921 = vmul.f32 %v1446, %v1446
        %v1922 = vmul.f32 %v1560, %v1560
        %v1923 = vmul.f32 %v1674, %v1674
        %v1924 = vmul.f32 %v1788, %v1788
        %v1925 = vmul.f32 %v1107, %v1107
        %v1926 = vmul.f32 %v1221, %v1221
        %v1927 = vmul.f32 %v1335, %v1335
        %v1928 = vmul.f32 %v1449, %v1449
        %v1929 = vmul.f32 %v1563, %v1563
        %v1930 = vmul.f32 %v1677, %v1677
        %v1931 = vmul.f32 %v1791, %v1791
        %v1932 = vmul.f32 %v1110, %v1110
        %v1933 = vmul.f32 %v1224, %v1224
        %v1934 = vmul.f32 %v1338, %v1338
        %v1935 = vmul.f32 %v1452, %v1452
        %v1936 = vmul.f32 %v1566, %v1566
        %v1937 = vmul.f32 %v1680, %v1680
        %v1938 = vmul.f32 %v1794, %v1794
        %v1939 = vmul.f32 %v1113, %v1113
        %v1940 = vmul.f32 %v1227, %v1227
        %v1941 = vmul.f32 %v1341, %v1341
        %v1942 = vmul.f32 %v1455, %v1455
        %v1943 = vmul.f32 %v1569, %v1569
        %v1944 = vmul.f32 %v1683, %v1683
        %v1945 = vmul.f32 %v1797, %v1797
        %v1946 = vadd.f32 %v1897, %v1904
        %v1947 = vadd.f32 %v1946, %v1911
        %v1948 = vadd.f32 %v1947, %v1918
        %v1949 = vadd.f32 %v1948, %v1925
        %v1950 = vadd.f32 %v1949, %v1932
        %v1951 = vsel %vm461, %v1939, 0.0
        %v1952 = vadd.f32 %v1950, %v1951
        %v1953 = vrot.slane %v1952, 4
        %v1954 = vadd.f32 %v1952, %v1953
        %v1955 = vrot.slane %v1954, 2
        %v1956 = vadd.f32 %v1954, %v1955
        %v1957 = vrot.slane %v1956, 1
        %v1958 = vadd.f32 %v1956, %v1957
        %v1959 = vadd.f32 %v1898, %v1905
        %v1960 = vadd.f32 %v1959, %v1912
        %v1961 = vadd.f32 %v1960, %v1919
        %v1962 = vadd.f32 %v1961, %v1926
        %v1963 = vadd.f32 %v1962, %v1933
        %v1964 = vsel %vm461, %v1940, 0.0
        %v1965 = vadd.f32 %v1963, %v1964
        %v1966 = vrot.slane %v1965, 4
        %v1967 = vadd.f32 %v1965, %v1966
        %v1968 = vrot.slane %v1967, 2
        %v1969 = vadd.f32 %v1967, %v1968
        %v1970 = vrot.slane %v1969, 1
        %v1971 = vadd.f32 %v1969, %v1970
        %v1972 = vadd.f32 %v1899, %v1906
        %v1973 = vadd.f32 %v1972, %v1913
        %v1974 = vadd.f32 %v1973, %v1920
        %v1975 = vadd.f32 %v1974, %v1927
        %v1976 = vadd.f32 %v1975, %v1934
        %v1977 = vsel %vm461, %v1941, 0.0
        %v1978 = vadd.f32 %v1976, %v1977
        %v1979 = vrot.slane %v1978, 4
        %v1980 = vadd.f32 %v1978, %v1979
        %v1981 = vrot.slane %v1980, 2
        %v1982 = vadd.f32 %v1980, %v1981
        %v1983 = vrot.slane %v1982, 1
        %v1984 = vadd.f32 %v1982, %v1983
        %v1985 = vadd.f32 %v1900, %v1907
        %v1986 = vadd.f32 %v1985, %v1914
        %v1987 = vadd.f32 %v1986, %v1921
        %v1988 = vadd.f32 %v1987, %v1928
        %v1989 = vadd.f32 %v1988, %v1935
        %v1990 = vsel %vm461, %v1942, 0.0
        %v1991 = vadd.f32 %v1989, %v1990
        %v1992 = vrot.slane %v1991, 4
        %v1993 = vadd.f32 %v1991, %v1992
        %v1994 = vrot.slane %v1993, 2
        %v1995 = vadd.f32 %v1993, %v1994
        %v1996 = vrot.slane %v1995, 1
        %v1997 = vadd.f32 %v1995, %v1996
        %v1998 = vadd.f32 %v1901, %v1908
        %v1999 = vadd.f32 %v1998, %v1915
        %v2000 = vadd.f32 %v1999, %v1922
        %v2001 = vadd.f32 %v2000, %v1929
        %v2002 = vadd.f32 %v2001, %v1936
        %v2003 = vsel %vm461, %v1943, 0.0
        %v2004 = vadd.f32 %v2002, %v2003
        %v2005 = vrot.slane %v2004, 4
        %v2006 = vadd.f32 %v2004, %v2005
        %v2007 = vrot.slane %v2006, 2
        %v2008 = vadd.f32 %v2006, %v2007
        %v2009 = vrot.slane %v2008, 1
        %v2010 = vadd.f32 %v2008, %v2009
        %v2011 = vadd.f32 %v1902, %v1909
        %v2012 = vadd.f32 %v2011, %v1916
        %v2013 = vadd.f32 %v2012, %v1923
        %v2014 = vadd.f32 %v2013, %v1930
        %v2015 = vadd.f32 %v2014, %v1937
        %v2016 = vsel %vm461, %v1944, 0.0
        %v2017 = vadd.f32 %v2015, %v2016
        %v2018 = vrot.slane %v2017, 4
        %v2019 = vadd.f32 %v2017, %v2018
        %v2020 = vrot.slane %v2019, 2
        %v2021 = vadd.f32 %v2019, %v2020
        %v2022 = vrot.slane %v2021, 1
        %v2023 = vadd.f32 %v2021, %v2022
        %v2024 = vadd.f32 %v1903, %v1910
        %v2025 = vadd.f32 %v2024, %v1917
        %v2026 = vadd.f32 %v2025, %v1924
        %v2027 = vadd.f32 %v2026, %v1931
        %v2028 = vadd.f32 %v2027, %v1938
        %v2029 = vsel %vm461, %v1945, 0.0
        %v2030 = vadd.f32 %v2028, %v2029
        %v2031 = vrot.slane %v2030, 4
        %v2032 = vadd.f32 %v2030, %v2031
        %v2033 = vrot.slane %v2032, 2
        %v2034 = vadd.f32 %v2032, %v2033
        %v2035 = vrot.slane %v2034, 1
        %v2036 = vadd.f32 %v2034, %v2035
        %v2037 = vmul.f32 %v1958, %v510
        %v2038 = vmul.f32 %v1971, %v510
        %v2039 = vmul.f32 %v1984, %v510
        %v2040 = vmul.f32 %v1997, %v510
        %v2041 = vmul.f32 %v2010, %v510
        %v2042 = vmul.f32 %v2023, %v510
        %v2043 = vmul.f32 %v2036, %v510
        %v2044 = vmul.f32 %v1890, %v1890
        %v2045 = vmul.f32 %v1891, %v1891
        %v2046 = vmul.f32 %v1892, %v1892
        %v2047 = vmul.f32 %v1893, %v1893
        %v2048 = vmul.f32 %v1894, %v1894
        %v2049 = vmul.f32 %v1895, %v1895
        %v2050 = vmul.f32 %v1896, %v1896
        %v2051 = vsub.f32 %v2037, %v2044
        %v2052 = vsub.f32 %v2038, %v2045
        %v2053 = vsub.f32 %v2039, %v2046
        %v2054 = vsub.f32 %v2040, %v2047
        %v2055 = vsub.f32 %v2041, %v2048
        %v2056 = vsub.f32 %v2042, %v2049
        %v2057 = vsub.f32 %v2043, %v2050
        %v2058 = vld [vmem:[%s379] sm:$0xff]
        %v2059 = vadd.f32 %v2051, 1e-05
        %v2060 = vadd.f32 %v2052, 1e-05
        %v2061 = vadd.f32 %v2053, 1e-05
        %v2062 = vadd.f32 %v2054, 1e-05
        %v2063 = vadd.f32 %v2055, 1e-05
        %v2064 = vadd.f32 %v2056, 1e-05
        %v2065 = vadd.f32 %v2057, 1e-05
        %v2066 = vrsqrt.pop %v2059
        %v2067 = vmul.f32 %v2066, %v2059
        %v2068 = vmul.f32 %v2067, %v2066
        %v2069 = vmul.f32 0.5, %v2068
        %v2070 = vsub.f32 1.5, %v2069
        %v2071 = vmul.f32 %v2066, %v2070
        %vm2072 = vweird.f32 %v2059
        %vm2073 = vweird.f32 %v2066
        %vm2074 = vmor %vm2072, %vm2073
        %v2075 = vsel %vm2074, %v2066, %v2071
        %v2076 = vrsqrt.pop %v2060
        %v2077 = vmul.f32 %v2076, %v2060
        %v2078 = vmul.f32 %v2077, %v2076
        %v2079 = vmul.f32 0.5, %v2078
        %v2080 = vsub.f32 1.5, %v2079
        %v2081 = vmul.f32 %v2076, %v2080
        %vm2082 = vweird.f32 %v2060
        %vm2083 = vweird.f32 %v2076
        %vm2084 = vmor %vm2082, %vm2083
        %v2085 = vsel %vm2084, %v2076, %v2081
        %v2086 = vrsqrt.pop %v2061
        %v2087 = vmul.f32 %v2086, %v2061
        %v2088 = vmul.f32 %v2087, %v2086
        %v2089 = vmul.f32 0.5, %v2088
        %v2090 = vsub.f32 1.5, %v2089
        %v2091 = vmul.f32 %v2086, %v2090
        %vm2092 = vweird.f32 %v2061
        %vm2093 = vweird.f32 %v2086
        %vm2094 = vmor %vm2092, %vm2093
        %v2095 = vsel %vm2094, %v2086, %v2091
        %v2096 = vrsqrt.pop %v2062
        %v2097 = vmul.f32 %v2096, %v2062
        %v2098 = vmul.f32 %v2097, %v2096
        %v2099 = vmul.f32 0.5, %v2098
        %v2100 = vsub.f32 1.5, %v2099
        %v2101 = vmul.f32 %v2096, %v2100
        %vm2102 = vweird.f32 %v2062
        %vm2103 = vweird.f32 %v2096
        %vm2104 = vmor %vm2102, %vm2103
        %v2105 = vsel %vm2104, %v2096, %v2101
        %v2106 = vrsqrt.pop %v2063
        %v2107 = vmul.f32 %v2106, %v2063
        %v2108 = vmul.f32 %v2107, %v2106
        %v2109 = vmul.f32 0.5, %v2108
        %v2110 = vsub.f32 1.5, %v2109
        %v2111 = vmul.f32 %v2106, %v2110
        %vm2112 = vweird.f32 %v2063
        %vm2113 = vweird.f32 %v2106
        %vm2114 = vmor %vm2112, %vm2113
        %v2115 = vsel %vm2114, %v2106, %v2111
        %v2116 = vrsqrt.pop %v2064
        %v2117 = vmul.f32 %v2116, %v2064
        %v2118 = vmul.f32 %v2117, %v2116
        %v2119 = vmul.f32 0.5, %v2118
        %v2120 = vsub.f32 1.5, %v2119
        %v2121 = vmul.f32 %v2116, %v2120
        %vm2122 = vweird.f32 %v2064
        %vm2123 = vweird.f32 %v2116
        %vm2124 = vmor %vm2122, %vm2123
        %v2125 = vsel %vm2124, %v2116, %v2121
        %v2126 = vrsqrt.pop %v2065
        %v2127 = vmul.f32 %v2126, %v2065
        %v2128 = vmul.f32 %v2127, %v2126
        %v2129 = vmul.f32 0.5, %v2128
        %v2130 = vsub.f32 1.5, %v2129
        %v2131 = vmul.f32 %v2126, %v2130
        %vm2132 = vweird.f32 %v2065
        %vm2133 = vweird.f32 %v2126
        %vm2134 = vmor %vm2132, %vm2133
        %v2135 = vsel %vm2134, %v2126, %v2131
        %v2143 = vrot.slane %v2085, 7
        %v2144 = vrot.slane %v2095, 6
        %v2145 = vrot.slane %v2105, 5
        %v2146 = vrot.slane %v2115, 4
        %v2147 = vrot.slane %v2125, 3
        %v2148 = vrot.slane %v2135, 2
        %v2149 = vsel %vm461, %v2075, %v2143
        %vm2150 = vcmask 1042434
        %v2151 = vsel %vm2150, %v2144, %v2145
        %v2152 = vsel %vm629, %v2149, %v2151
        %vm2153 = vcmask 1044484
        %v2154 = vsel %vm2153, %v2146, %v2147
        %vm2155 = vcmask 1045508
        %v2156 = vsel %vm2155, %v2154, %v2148
        %vm2157 = vcmask 1043456
        %v2158 = vsel %vm2157, %v2152, %v2156
        %v2160 = vmul.f32 %v2058, %v2158
        %v2161 = vld [vmem:[%s389] sm:$0xff]
        %v2169 = vrot.slane %v1891, 7
        %v2170 = vrot.slane %v1892, 6
        %v2171 = vrot.slane %v1893, 5
        %v2172 = vrot.slane %v1894, 4
        %v2173 = vrot.slane %v1895, 3
        %v2174 = vrot.slane %v1896, 2
        %v2175 = vsel %vm461, %v1890, %v2169
        %v2176 = vsel %vm2150, %v2170, %v2171
        %v2177 = vsel %vm629, %v2175, %v2176
        %v2178 = vsel %vm2153, %v2172, %v2173
        %v2179 = vsel %vm2155, %v2178, %v2174
        %v2180 = vsel %vm2157, %v2177, %v2179
        %v2182 = vmul.f32 %v2160, %v2180
        %v2183 = vsub.f32 %v2161, %v2182
        %v2185 = vperm.slane %v2160, 0
        %v2186 = vperm.slane %v2160, 1
        %v2187 = vperm.slane %v2160, 2
        %v2188 = vperm.slane %v2160, 3
        %v2189 = vperm.slane %v2160, 4
        %v2190 = vperm.slane %v2160, 5
        %v2191 = vperm.slane %v2160, 6
        %v2199 = vmul.f32 %v2185, %v1095
        %v2200 = vmul.f32 %v2186, %v1209
        %v2201 = vmul.f32 %v2187, %v1323
        %v2202 = vmul.f32 %v2188, %v1437
        %v2203 = vmul.f32 %v2189, %v1551
        %v2204 = vmul.f32 %v2190, %v1665
        %v2205 = vmul.f32 %v2191, %v1779
        %v2206 = vmul.f32 %v2185, %v1098
        %v2207 = vmul.f32 %v2186, %v1212
        %v2208 = vmul.f32 %v2187, %v1326
        %v2209 = vmul.f32 %v2188, %v1440
        %v2210 = vmul.f32 %v2189, %v1554
        %v2211 = vmul.f32 %v2190, %v1668
        %v2212 = vmul.f32 %v2191, %v1782
        %v2213 = vmul.f32 %v2185, %v1101
        %v2214 = vmul.f32 %v2186, %v1215
        %v2215 = vmul.f32 %v2187, %v1329
        %v2216 = vmul.f32 %v2188, %v1443
        %v2217 = vmul.f32 %v2189, %v1557
        %v2218 = vmul.f32 %v2190, %v1671
        %v2219 = vmul.f32 %v2191, %v1785
        %v2220 = vmul.f32 %v2185, %v1104
        %v2221 = vmul.f32 %v2186, %v1218
        %v2222 = vmul.f32 %v2187, %v1332
        %v2223 = vmul.f32 %v2188, %v1446
        %v2224 = vmul.f32 %v2189, %v1560
        %v2225 = vmul.f32 %v2190, %v1674
        %v2226 = vmul.f32 %v2191, %v1788
        %v2227 = vmul.f32 %v2185, %v1107
        %v2228 = vmul.f32 %v2186, %v1221
        %v2229 = vmul.f32 %v2187, %v1335
        %v2230 = vmul.f32 %v2188, %v1449
        %v2231 = vmul.f32 %v2189, %v1563
        %v2232 = vmul.f32 %v2190, %v1677
        %v2233 = vmul.f32 %v2191, %v1791
        %v2234 = vmul.f32 %v2185, %v1110
        %v2235 = vmul.f32 %v2186, %v1224
        %v2236 = vmul.f32 %v2187, %v1338
        %v2237 = vmul.f32 %v2188, %v1452
        %v2238 = vmul.f32 %v2189, %v1566
        %v2239 = vmul.f32 %v2190, %v1680
        %v2240 = vmul.f32 %v2191, %v1794
        %v2241 = vmul.f32 %v2185, %v1113
        %v2242 = vmul.f32 %v2186, %v1227
        %v2243 = vmul.f32 %v2187, %v1341
        %v2244 = vmul.f32 %v2188, %v1455
        %v2245 = vmul.f32 %v2189, %v1569
        %v2246 = vmul.f32 %v2190, %v1683
        %v2247 = vmul.f32 %v2191, %v1797
        %v2249 = vperm.slane %v2183, 0
        %v2250 = vperm.slane %v2183, 1
        %v2251 = vperm.slane %v2183, 2
        %v2252 = vperm.slane %v2183, 3
        %v2253 = vperm.slane %v2183, 4
        %v2254 = vperm.slane %v2183, 5
        %v2255 = vperm.slane %v2183, 6
        %v2263 = vadd.f32 %v2199, %v2249
        %v2264 = vadd.f32 %v2200, %v2250
        %v2265 = vadd.f32 %v2201, %v2251
        %v2266 = vadd.f32 %v2202, %v2252
        %v2267 = vadd.f32 %v2203, %v2253
        %v2268 = vadd.f32 %v2204, %v2254
        %v2269 = vadd.f32 %v2205, %v2255
        %v2270 = vadd.f32 %v2206, %v2249
        %v2271 = vadd.f32 %v2207, %v2250
        %v2272 = vadd.f32 %v2208, %v2251
        %v2273 = vadd.f32 %v2209, %v2252
        %v2274 = vadd.f32 %v2210, %v2253
        %v2275 = vadd.f32 %v2211, %v2254
        %v2276 = vadd.f32 %v2212, %v2255
        %v2277 = vadd.f32 %v2213, %v2249
        %v2278 = vadd.f32 %v2214, %v2250
        %v2279 = vadd.f32 %v2215, %v2251
        %v2280 = vadd.f32 %v2216, %v2252
        %v2281 = vadd.f32 %v2217, %v2253
        %v2282 = vadd.f32 %v2218, %v2254
        %v2283 = vadd.f32 %v2219, %v2255
        %v2284 = vadd.f32 %v2220, %v2249
        %v2285 = vadd.f32 %v2221, %v2250
        %v2286 = vadd.f32 %v2222, %v2251
        %v2287 = vadd.f32 %v2223, %v2252
        %v2288 = vadd.f32 %v2224, %v2253
        %v2289 = vadd.f32 %v2225, %v2254
        %v2290 = vadd.f32 %v2226, %v2255
        %v2291 = vadd.f32 %v2227, %v2249
        %v2292 = vadd.f32 %v2228, %v2250
        %v2293 = vadd.f32 %v2229, %v2251
        %v2294 = vadd.f32 %v2230, %v2252
        %v2295 = vadd.f32 %v2231, %v2253
        %v2296 = vadd.f32 %v2232, %v2254
        %v2297 = vadd.f32 %v2233, %v2255
        %v2298 = vadd.f32 %v2234, %v2249
        %v2299 = vadd.f32 %v2235, %v2250
        %v2300 = vadd.f32 %v2236, %v2251
        %v2301 = vadd.f32 %v2237, %v2252
        %v2302 = vadd.f32 %v2238, %v2253
        %v2303 = vadd.f32 %v2239, %v2254
        %v2304 = vadd.f32 %v2240, %v2255
        %v2305 = vadd.f32 %v2241, %v2249
        %v2306 = vadd.f32 %v2242, %v2250
        %v2307 = vadd.f32 %v2243, %v2251
        %v2308 = vadd.f32 %v2244, %v2252
        %v2309 = vadd.f32 %v2245, %v2253
        %v2310 = vadd.f32 %v2246, %v2254
        %v2311 = vadd.f32 %v2247, %v2255
        %2312 = vst [vmem:[%s430] sm:$0xff] %v2263
        %2313 = vst [vmem:[%s430 + $0x8] sm:$0xff] %v2264
        %2314 = vst [vmem:[%s430 + $0x10] sm:$0xff] %v2265
        %2315 = vst [vmem:[%s430 + $0x18] sm:$0xff] %v2266
        %2316 = vst [vmem:[%s430 + $0x20] sm:$0xff] %v2267
        %2317 = vst [vmem:[%s430 + $0x28] sm:$0xff] %v2268
        %2318 = vst [vmem:[%s430 + $0x30] sm:$0xff] %v2269
        %2319 = vst [vmem:[%s430 + $0x38] sm:$0xff] %v2270
        %2320 = vst [vmem:[%s430 + $0x40] sm:$0xff] %v2271
        %2321 = vst [vmem:[%s430 + $0x48] sm:$0xff] %v2272
        %2322 = vst [vmem:[%s430 + $0x50] sm:$0xff] %v2273
        %2323 = vst [vmem:[%s430 + $0x58] sm:$0xff] %v2274
        %2324 = vst [vmem:[%s430 + $0x60] sm:$0xff] %v2275
        %2325 = vst [vmem:[%s430 + $0x68] sm:$0xff] %v2276
        %2326 = vst [vmem:[%s430 + $0x70] sm:$0xff] %v2277
        %2327 = vst [vmem:[%s430 + $0x78] sm:$0xff] %v2278
        %2328 = vst [vmem:[%s430 + $0x80] sm:$0xff] %v2279
        %2329 = vst [vmem:[%s430 + $0x88] sm:$0xff] %v2280
        %2330 = vst [vmem:[%s430 + $0x90] sm:$0xff] %v2281
        %2331 = vst [vmem:[%s430 + $0x98] sm:$0xff] %v2282
        %2332 = vst [vmem:[%s430 + $0xa0] sm:$0xff] %v2283
        %2333 = vst [vmem:[%s430 + $0xa8] sm:$0xff] %v2284
        %2334 = vst [vmem:[%s430 + $0xb0] sm:$0xff] %v2285
        %2335 = vst [vmem:[%s430 + $0xb8] sm:$0xff] %v2286
        %2336 = vst [vmem:[%s430 + $0xc0] sm:$0xff] %v2287
        %2337 = vst [vmem:[%s430 + $0xc8] sm:$0xff] %v2288
        %2338 = vst [vmem:[%s430 + $0xd0] sm:$0xff] %v2289
        %2339 = vst [vmem:[%s430 + $0xd8] sm:$0xff] %v2290
        %2340 = vst [vmem:[%s430 + $0xe0] sm:$0xff] %v2291
        %2341 = vst [vmem:[%s430 + $0xe8] sm:$0xff] %v2292
        %2342 = vst [vmem:[%s430 + $0xf0] sm:$0xff] %v2293
        %2343 = vst [vmem:[%s430 + $0xf8] sm:$0xff] %v2294
        %2344 = vst [vmem:[%s430 + $0x100] sm:$0xff] %v2295
        %2345 = vst [vmem:[%s430 + $0x108] sm:$0xff] %v2296
        %2346 = vst [vmem:[%s430 + $0x110] sm:$0xff] %v2297
        %2347 = vst [vmem:[%s430 + $0x118] sm:$0xff] %v2298
        %2348 = vst [vmem:[%s430 + $0x120] sm:$0xff] %v2299
        %2349 = vst [vmem:[%s430 + $0x128] sm:$0xff] %v2300
        %2350 = vst [vmem:[%s430 + $0x130] sm:$0xff] %v2301
        %2351 = vst [vmem:[%s430 + $0x138] sm:$0xff] %v2302
        %2352 = vst [vmem:[%s430 + $0x140] sm:$0xff] %v2303
        %2353 = vst [vmem:[%s430 + $0x148] sm:$0xff] %v2304
        %2354 = vst [vmem:[%s430 + $0x150] sm:$0x1] %v2305
        %2355 = vst [vmem:[%s430 + $0x158] sm:$0x1] %v2306
        %2356 = vst [vmem:[%s430 + $0x160] sm:$0x1] %v2307
        %2357 = vst [vmem:[%s430 + $0x168] sm:$0x1] %v2308
        %2358 = vst [vmem:[%s430 + $0x170] sm:$0x1] %v2309
        %2359 = vst [vmem:[%s430 + $0x178] sm:$0x1] %v2310
        %2360 = vst [vmem:[%s430 + $0x180] sm:$0x1] %v2311
        %s2361 = sand.u32 %s194, 1
        %s2362 = scalar_lea.sflag [#allocation4], %s2361
        %s2363 = sand.u32 %s194, 1
        %s2364 = smul.addr %s2363, 392
        %s2365 = scalar_lea.vmem [#allocation13], %s2364
        // Predicated region
        $region77: #{tpu_custom_call.1} parent=47 // pred_check
          %p2366 = pneg %p204
        $region78: #{tpu_custom_call.1} parent=47 // pred_check_branch
          %2368 = sbr.rel (%p2366) target = $region80
        $region79: #{tpu_custom_call.1} parent=47 // pred_region
          %s2369 = smul.u32 7, %s24
          %2371 = vsyncadd %s2362, 0
          %s2372 = smul.addr %s2369, 8
          %s2373 = scalar_lea.hbm %s7, %s2372
          %s2374 = sshll.u32 %s2365, 4
          %s2375 = int_to_ptr.vmem [resolvable:$true] %s2374
          %s2376 = sshll.u32 %s2373, 4
          %s2377 = int_to_ptr.hbm [resolvable:$true] %s2376
          %2382 = dma.vmem_to_hbm [thread:$0]  %s2375, 6272, %s2377, %s2362, 896, 1792, 56
        $region80: #{tpu_custom_call.1} parent=47 // pred_fallthru
          _
      $region48: #{tpu_custom_call.1} parent=5 // pred_fallthru
        _
      %p2383 = scmp.le.s32.totalorder 2, %s19
      // Predicated region
      $region81: #{tpu_custom_call.1} parent=5 // pred_check
        %p2384 = pneg %p2383
      $region82: #{tpu_custom_call.1} parent=5 // pred_check_branch
        %2386 = sbr.rel (%p2384) target = $region84
      $region83: #{tpu_custom_call.1} parent=5 // pred_region
        %s2387 = ssub.s32 %s19, 2
        // Predicated region
        $region85: #{tpu_custom_call.1} parent=83 // pred_check
          %p2388 = pneg %p210
        $region86: #{tpu_custom_call.1} parent=83 // pred_check_branch
          %2390 = sbr.rel (%p2388) target = $region88
        $region87: #{tpu_custom_call.1} parent=83 // pred_region
          %s2391 = sand.u32 %s195, 1
          %s2392 = scalar_lea.sflag [#allocation4], %s2391
          %s2393 = sand.u32 %s195, 1
          %s2394 = smul.addr %s2393, 392
          %s2395 = scalar_lea.vmem [#allocation13], %s2394
          %2397 = dma.done %s2392, 6272
        $region88: #{tpu_custom_call.1} parent=83 // pred_fallthru
          _
      $region84: #{tpu_custom_call.1} parent=5 // pred_fallthru
        _
    $region6: #{tpu_custom_call.1} parent=1 // loop_footer
      %s23 = sadd.s32 1, %s19
    $region7: #{tpu_custom_call.1} parent=1 // loop_footer_branch
      %18 = sbr.rel target = $region3
    $region8: #{tpu_custom_call.1} parent=1 // loop_exit
      _
    %2398 = vsyncpa [#allocation3], 1
    %s2399 = scalar_lea.sflag [#allocation3], 1
    %2400 = vsyncpa %s2399, 1
    %2401 = vsyncpa [#allocation6], 1
    %2402 = vsyncpa [#allocation9], 1
    %2403 = vsyncpa [#allocation4], 1
    %s2404 = scalar_lea.sflag [#allocation4], 1
    %2405 = vsyncpa %s2404, 1

</llo_original>
